<compile_context>
chip_gen: v5e
topology: v5e:2x2
jax: 0.10.0
libtpu: 0.0.40
codegen_flags: <defaults>
</compile_context>

<pallas_src>
import jax
import jax.numpy as jnp
from jax.experimental import pallas as pl
from jax.experimental.pallas import tpu as pltpu

LANE = 128                      # TPU lane width; channel dims padded to this
MAX_TILE = 1024                 # A_hat row/col tile for the tiled path
FUSED_MAX_NODES = 2048          # N_pad threshold for the fully fused kernel
                                #  (A bf16 = 8 MiB, x2 buffers + activations
                                #   stays well under 48 MiB on v5e/v6e/v7x)
VMEM_LIMIT_BYTES = 48 * 1024 * 1024   # <= physical VMEM on all generations


def _round_up(x, m):
    return ((x + m - 1) // m) * m


def _agg_layout(n):
    """(n_pad, tile) for the tiled path: tile divides n_pad, tile % 128 == 0,
    and >=2 row tiles whenever n_pad >= 256 (v7x megacore sharding)."""
    n128 = _round_up(n, LANE)
    tile = max(LANE, min(MAX_TILE, (n128 // 2) // LANE * LANE))
    n_pad = _round_up(n, tile)
    return n_pad, tile


# ----------------------------------------------------------------------------
# Pallas kernels
# ----------------------------------------------------------------------------
def fused_small_kernel(a_ref, x_ref, pool_ref,
                       w1_ref, s1_ref, t1_ref,
                       w2_ref, s2_ref, t2_ref,
                       w3_ref, s3_ref, t3_ref,
                       w4_ref, s4_ref, t4_ref,
                       lw1_ref, lb1_ref, lw2_ref, lb2_ref,
                       o_ref):
    """All 4 GCN layers + folded BN + ReLU + mean-pool + MLP head.

    A_hat stays resident in VMEM: it is read from HBM exactly once and reused
    by all four aggregations; no intermediate activation ever touches HBM.
    """
    h = x_ref[...]                                      # bf16 [N_pad, Cin_p]
    for w_ref, s_ref, t_ref in ((w1_ref, s1_ref, t1_ref),
                                (w2_ref, s2_ref, t2_ref),
                                (w3_ref, s3_ref, t3_ref),
                                (w4_ref, s4_ref, t4_ref)):
        xw = jnp.dot(h, w_ref[...], preferred_element_type=jnp.float32)
        agg = jnp.dot(a_ref[...], xw.astype(jnp.bfloat16),
                      preferred_element_type=jnp.float32)
        h = jnp.maximum(agg * s_ref[...] + t_ref[...], 0.0).astype(jnp.bfloat16)
    # global_mean_pool (bf16 x bf16 -> f32) + MLP head
    g = jnp.dot(pool_ref[...], h, preferred_element_type=jnp.float32)
    z = jnp.maximum(jnp.dot(g, lw1_ref[...],
                            preferred_element_type=jnp.float32) + lb1_ref[...],
                    0.0)
    o_ref[...] = jnp.dot(z, lw2_ref[...],
                         preferred_element_type=jnp.float32) + lb2_ref[...]


def xw_kernel(x_ref, w_ref, o_ref):
    """Row-tiled X @ W (bf16 inputs, f32 accumulation, bf16 output)."""
    o_ref[...] = jnp.dot(
        x_ref[...], w_ref[...], preferred_element_type=jnp.float32
    ).astype(o_ref.dtype)


def gcn_agg_fused_kernel(cmap_ref, msk_ref, a_ref, xw_ref, scale_ref,
                         shift_ref, wn_ref, o_ref, acc_ref):
    """Tiled GCN aggregation + folded BN + ReLU, fused with the NEXT layer's
    projection.  Empty A tiles (block-diagonal structure) are skipped:
    the index_map repeats the previous nonzero tile (no new DMA) and the
    occupancy mask gates the MXU accumulate."""
    i = pl.program_id(0)
    k = pl.program_id(1)

    @pl.when(k == 0)
    def _():
        acc_ref[...] = jnp.zeros_like(acc_ref)

    @pl.when(msk_ref[i, k] != 0)
    def _():
        acc_ref[...] += jnp.dot(a_ref[...], xw_ref[...],
                                preferred_element_type=jnp.float32)

    @pl.when(k == pl.num_programs(1) - 1)
    def _():
        h = jnp.maximum(acc_ref[...] * scale_ref[...] + shift_ref[...], 0.0)
        o_ref[...] = jnp.dot(h.astype(wn_ref.dtype), wn_ref[...],
                             preferred_element_type=jnp.float32
                             ).astype(o_ref.dtype)


def gcn_agg_last_kernel(cmap_ref, msk_ref, a_ref, xw_ref, scale_ref,
                        shift_ref, o_ref, acc_ref):
    """Final GCN layer: tiled aggregation + folded BN + ReLU (no projection)."""
    i = pl.program_id(0)
    k = pl.program_id(1)

    @pl.when(k == 0)
    def _():
        acc_ref[...] = jnp.zeros_like(acc_ref)

    @pl.when(msk_ref[i, k] != 0)
    def _():
        acc_ref[...] += jnp.dot(a_ref[...], xw_ref[...],
                                preferred_element_type=jnp.float32)

    @pl.when(k == pl.num_programs(1) - 1)
    def _():
        h = jnp.maximum(acc_ref[...] * scale_ref[...] + shift_ref[...], 0.0)
        o_ref[...] = h.astype(o_ref.dtype)


def head_kernel(p_ref, x_ref, w1_ref, b1_ref, w2_ref, b2_ref, o_ref, acc_ref):
    """global_mean_pool (tiled over nodes, bf16 x bf16) + lin1 + ReLU + lin2."""
    k = pl.program_id(0)

    @pl.when(k == 0)
    def _():
        acc_ref[...] = jnp.zeros_like(acc_ref)

    acc_ref[...] += jnp.dot(p_ref[...], x_ref[...],
                            preferred_element_type=jnp.float32)

    @pl.when(k == pl.num_programs(0) - 1)
    def _():
        h = jnp.dot(acc_ref[...], w1_ref[...],
                    preferred_element_type=jnp.float32) + b1_ref[...]
        h = jnp.maximum(h, 0.0)
        o_ref[...] = jnp.dot(h, w2_ref[...],
                             preferred_element_type=jnp.float32) + b2_ref[...]


# ----------------------------------------------------------------------------
# pallas_call wrappers
# ----------------------------------------------------------------------------
def gcn_fused_small(a_pad, x_pad, pool_pad, params):
    n_pad = a_pad.shape[0]
    cin_p = x_pad.shape[1]
    c_p = params["conv1_w"].shape[1]
    h2_p = params["lin1_w"].shape[1]
    o_p = params["lin2_w"].shape[1]
    g_pad = pool_pad.shape[0]

    def full(shape):
        return pl.BlockSpec(shape, lambda i: (0, 0))

    args = [a_pad, x_pad, pool_pad]
    in_specs = [full((n_pad, n_pad)), full((n_pad, cin_p)), full((g_pad, n_pad))]
    for i in range(1, 5):
        w = params[f"conv{i}_w"]
        args += [w, params[f"bn{i}_scale"], params[f"bn{i}_shift"]]
        in_specs += [full(w.shape), full((1, c_p)), full((1, c_p))]
    args += [params["lin1_w"], params["lin1_b"],
             params["lin2_w"], params["lin2_b"]]
    in_specs += [full((c_p, h2_p)), full((1, h2_p)),
                 full((h2_p, o_p)), full((1, o_p))]

    return pl.pallas_call(
        fused_small_kernel,
        out_shape=jax.ShapeDtypeStruct((g_pad, o_p), jnp.float32),
        grid=(1,),
        in_specs=in_specs,
        out_specs=full((g_pad, o_p)),
        compiler_params=pltpu.CompilerParams(
            dimension_semantics=("arbitrary",),
            vmem_limit_bytes=VMEM_LIMIT_BYTES),
    )(*args)


def gcn_xw(x_pad, w, *, tile):
    n_pad, cin_p = x_pad.shape
    c_p = w.shape[1]
    return pl.pallas_call(
        xw_kernel,
        out_shape=jax.ShapeDtypeStruct((n_pad, c_p), jnp.bfloat16),
        grid=(n_pad // tile,),
        in_specs=[
            pl.BlockSpec((tile, cin_p), lambda i: (i, 0)),
            pl.BlockSpec((cin_p, c_p), lambda i: (0, 0)),
        ],
        out_specs=pl.BlockSpec((tile, c_p), lambda i: (i, 0)),
        compiler_params=pltpu.CompilerParams(
            dimension_semantics=("parallel",),
            vmem_limit_bytes=VMEM_LIMIT_BYTES),
    )(x_pad, w)


def gcn_agg(a_pad, xw, scale, shift, cmap, msk, w_next=None, *, tile):
    n_pad = a_pad.shape[0]
    c_p = xw.shape[1]
    nt = n_pad // tile

    # Data-dependent index maps: for empty tiles cmap repeats an already
    # fetched block index, so Pallas issues no new DMA for A or XW.
    a_spec = pl.BlockSpec((tile, tile), lambda i, k, cm, mk: (i, cm[i, k]))
    xw_spec = pl.BlockSpec((tile, c_p), lambda i, k, cm, mk: (cm[i, k], 0))
    vec_spec = pl.BlockSpec((1, c_p), lambda i, k, cm, mk: (0, 0))
    out_spec = pl.BlockSpec((tile, c_p), lambda i, k, cm, mk: (i, 0))

    if w_next is not None:
        kern = gcn_agg_fused_kernel
        in_specs = [a_spec, xw_spec, vec_spec, vec_spec,
                    pl.BlockSpec((c_p, c_p), lambda i, k, cm, mk: (0, 0))]
        args = (cmap, msk, a_pad, xw, scale, shift, w_next)
    else:
        kern = gcn_agg_last_kernel
        in_specs = [a_spec, xw_spec, vec_spec, vec_spec]
        args = (cmap, msk, a_pad, xw, scale, shift)

    return pl.pallas_call(
        kern,
        out_shape=jax.ShapeDtypeStruct((n_pad, c_p), jnp.bfloat16),
        grid_spec=pltpu.PrefetchScalarGridSpec(
            num_scalar_prefetch=2,
            grid=(nt, nt),
            in_specs=in_specs,
            out_specs=out_spec,
            scratch_shapes=[pltpu.VMEM((tile, c_p), jnp.float32)]),
        compiler_params=pltpu.CompilerParams(
            dimension_semantics=("parallel", "arbitrary"),
            vmem_limit_bytes=VMEM_LIMIT_BYTES),
    )(*args)


def gcn_head(pool_pad, h_pad, w1, b1, w2, b2, *, tile):
    g_pad, n_pad = pool_pad.shape
    c_p = h_pad.shape[1]
    h2_p = w1.shape[1]
    o_p = w2.shape[1]
    nt = n_pad // tile
    return pl.pallas_call(
        head_kernel,
        out_shape=jax.ShapeDtypeStruct((g_pad, o_p), jnp.float32),
        grid=(nt,),
        in_specs=[
            pl.BlockSpec((g_pad, tile), lambda k: (0, k)),
            pl.BlockSpec((tile, c_p), lambda k: (k, 0)),
            pl.BlockSpec((c_p, h2_p), lambda k: (0, 0)),
            pl.BlockSpec((1, h2_p), lambda k: (0, 0)),
            pl.BlockSpec((h2_p, o_p), lambda k: (0, 0)),
            pl.BlockSpec((1, o_p), lambda k: (0, 0)),
        ],
        out_specs=pl.BlockSpec((g_pad, o_p), lambda k: (0, 0)),
        scratch_shapes=[pltpu.VMEM((g_pad, c_p), jnp.float32)],
        compiler_params=pltpu.CompilerParams(
            dimension_semantics=("arbitrary",),
            vmem_limit_bytes=VMEM_LIMIT_BYTES),
    )(pool_pad, h_pad, w1, b1, w2, b2)


# ----------------------------------------------------------------------------
# Plain-JAX glue: graph preprocessing + parameter construction
# ----------------------------------------------------------------------------
def build_normalized_adjacency_padded(edge_index, num_nodes, n_pad,
                                      dtype=jnp.bfloat16):
    """Padded D^{-1/2}(A + I)D^{-1/2} built directly at [n_pad, n_pad].

    NOTE: multi-edges are deduplicated (binary adjacency) and explicit
    self-loops are not double counted; PyG GCNConv sums duplicates, so
    multigraph inputs would differ.
    """
    src, dst = edge_index[0], edge_index[1]
    a = jnp.zeros((n_pad, n_pad), jnp.float32).at[dst, src].set(1.0)
    idx = jnp.arange(num_nodes)
    a = a.at[idx, idx].set(1.0)                      # self loops (real rows only)
    deg = jnp.sum(a, axis=1)
    d_inv_sqrt = jnp.where(deg > 0, jax.lax.rsqrt(jnp.maximum(deg, 1e-12)), 0.0)
    return (d_inv_sqrt[:, None] * a * d_inv_sqrt[None, :]).astype(dtype)


def build_pool_matrix_padded(batch, num_graphs, n_pad, g_pad,
                             dtype=jnp.bfloat16):
    """Padded [G_pad, N_pad] matrix computing per-graph mean of node features."""
    n = batch.shape[0]
    one_hot = (batch[None, :] == jnp.arange(num_graphs)[:, None]).astype(jnp.float32)
    counts = jnp.maximum(jnp.sum(one_hot, axis=1, keepdims=True), 1.0)
    pool = one_hot / counts
    out = jnp.zeros((g_pad, n_pad), jnp.float32).at[:num_graphs, :n].set(pool)
    return out.astype(dtype)


def _tile_maps(a_pad, tile):
    """Per-row-tile occupancy mask + column map for block-diagonal skipping.

    cmap[i, k] = k if tile (i, k) of A is nonzero, otherwise the index of an
    already-visited nonzero tile (so the pipeline re-uses the VMEM buffer and
    issues no DMA).  mask[i, k] gates the accumulate inside the kernel.
    """
    n_pad = a_pad.shape[0]
    nt = n_pad // tile
    occ = (a_pad != 0).reshape(nt, tile, nt, tile).any(axis=(1, 3))   # [nt, nt]
    idx = jnp.arange(nt, dtype=jnp.int32)
    last = jax.lax.cummax(jnp.where(occ, idx[None, :], -1), axis=1)
    nxt = jax.lax.cummin(jnp.where(occ, idx[None, :], nt), axis=1, reverse=True)
    cmap = jnp.where(last >= 0, last, nxt)
    cmap = jnp.clip(cmap, 0, nt - 1).astype(jnp.int32)
    return cmap, occ.astype(jnp.int32)


def glorot(key, shape):
    fan_in, fan_out = shape
    limit = jnp.sqrt(6.0 / (fan_in + fan_out))
    return jax.random.uniform(key, shape, jnp.float32, -limit, limit)


def make_params(key, in_channels, hidden, out_channels, eps=1e-5):
    cin_p = _round_up(in_channels, LANE)
    h_p = _round_up(hidden, LANE)
    h2_p = _round_up(max(hidden // 2, 1), LANE)
    o_p = _round_up(out_channels, LANE)

    ks = jax.random.split(key, 12)
    p = {}
    dims = [(in_channels, cin_p, hidden, h_p),
            (hidden, h_p, hidden, h_p),
            (hidden, h_p, hidden, h_p),
            (hidden, h_p, hidden, h_p)]
    for i, (ci, ci_p, co, co_p) in enumerate(dims, start=1):
        w = glorot(ks[i - 1], (ci, co))
        w_pad = jnp.zeros((ci_p, co_p), jnp.float32).at[:ci, :co].set(w)
        p[f"conv{i}_w"] = w_pad.astype(jnp.bfloat16)
        # GCNConv bias (zero-init) folded with eval-mode BatchNorm1d
        # (gamma=1, beta=0, running mean=0, running var=1):
        #   y = (agg + b - mean) * gamma / sqrt(var + eps) + beta
        bias = jnp.zeros((co,), jnp.float32)
        gamma = jnp.ones((co,), jnp.float32)
        beta = jnp.zeros((co,), jnp.float32)
        r_mean = jnp.zeros((co,), jnp.float32)
        r_var = jnp.ones((co,), jnp.float32)
        scale = gamma / jnp.sqrt(r_var + eps)
        shift = beta + (bias - r_mean) * scale
        p[f"bn{i}_scale"] = jnp.zeros((1, co_p), jnp.float32).at[0, :co].set(scale)
        p[f"bn{i}_shift"] = jnp.zeros((1, co_p), jnp.float32).at[0, :co].set(shift)

    w1 = glorot(ks[8], (hidden, hidden // 2))
    b1 = 0.01 * jax.random.normal(ks[9], (hidden // 2,), jnp.float32)
    w2 = glorot(ks[10], (hidden // 2, out_channels))
    b2 = 0.01 * jax.random.normal(ks[11], (out_channels,), jnp.float32)
    p["lin1_w"] = jnp.zeros((h_p, h2_p), jnp.float32).at[:hidden, :hidden // 2].set(w1)
    p["lin1_b"] = jnp.zeros((1, h2_p), jnp.float32).at[0, :hidden // 2].set(b1)
    p["lin2_w"] = jnp.zeros((h2_p, o_p), jnp.float32).at[:hidden // 2, :out_channels].set(w2)
    p["lin2_b"] = jnp.zeros((1, o_p), jnp.float32).at[0, :out_channels].set(b2)
    return p


# ----------------------------------------------------------------------------
# Forward pass (eval mode: dropout = identity)
# ----------------------------------------------------------------------------
def gcn_forward(params, x, edge_index, batch, num_graphs, out_channels,
                *, force_tiled=False):
    n, cin = x.shape
    cin_p = params["conv1_w"].shape[0]
    g_pad = _round_up(num_graphs, 8)

    use_fused = (not force_tiled) and n <= FUSED_MAX_NODES
    if use_fused:
        n_pad, tile = _round_up(n, LANE), None
    else:
        n_pad, tile = _agg_layout(n)

    a_pad = build_normalized_adjacency_padded(edge_index, n, n_pad)
    x_pad = jnp.zeros((n_pad, cin_p), jnp.bfloat16).at[:n, :cin].set(
        x.astype(jnp.bfloat16))
    pool_pad = build_pool_matrix_padded(batch, num_graphs, n_pad, g_pad)

    if use_fused:
        out_pad = gcn_fused_small(a_pad, x_pad, pool_pad, params)
    else:
        cmap, msk = _tile_maps(a_pad, tile)
        # Layer 1 projection; each aggregation fuses the next projection.
        xw = gcn_xw(x_pad, params["conv1_w"], tile=tile)
        for i in (1, 2, 3):
            xw = gcn_agg(a_pad, xw,
                         params[f"bn{i}_scale"], params[f"bn{i}_shift"],
                         cmap, msk, w_next=params[f"conv{i + 1}_w"], tile=tile)
        h = gcn_agg(a_pad, xw, params["bn4_scale"], params["bn4_shift"],
                    cmap, msk, tile=tile)
        out_pad = gcn_head(pool_pad, h,
                           params["lin1_w"], params["lin1_b"],
                           params["lin2_w"], params["lin2_b"], tile=tile)
    # TODO(synk): Dropout layers are identity in eval mode; no kernel needed.
    return out_pad[:num_graphs, :out_channels]


def gcn_reference(params, x, edge_index, batch, num_graphs, out_channels):
    """Pure-JAX reference (same bf16 A / weights, f32 math elsewhere)."""
    n, cin = x.shape
    cin_p = params["conv1_w"].shape[0]
    a = build_normalized_adjacency_padded(edge_index, n, n).astype(jnp.float32)
    h = jnp.zeros((n, cin_p), jnp.float32).at[:, :cin].set(x)
    for i in range(1, 5):
        w = params[f"conv{i}_w"].astype(jnp.float32)
        h = a @ (h @ w)
        h = jnp.maximum(h * params[f"bn{i}_scale"] + params[f"bn{i}_shift"], 0.0)
    one_hot = (batch[None, :] == jnp.arange(num_graphs)[:, None]).astype(jnp.float32)
    pool = one_hot / jnp.maximum(one_hot.sum(axis=1, keepdims=True), 1.0)
    g = pool @ h
    z = jnp.maximum(g @ params["lin1_w"] + params["lin1_b"], 0.0)
    return (z @ params["lin2_w"] + params["lin2_b"])[:, :out_channels]


# ----------------------------------------------------------------------------
if __name__ == "__main__":
    IN_CH, HIDDEN, OUT_CH = 8, 32, 4

    key = jax.random.PRNGKey(0)
    k_x1, k_x2, k_p = jax.random.split(key, 3)
    params = make_params(k_p, IN_CH, HIDDEN, OUT_CH)

    def ring_graphs(num_graphs, nodes_per_graph):
        edges = []
        for g in range(num_graphs):
            base = g * nodes_per_graph
            for i in range(nodes_per_graph):
                s, d = base + i, base + (i + 1) % nodes_per_graph
                edges.append((s, d))
                edges.append((d, s))
            edges.append((base, base + nodes_per_graph // 2))
            edges.append((base + nodes_per_graph // 2, base))
        edge_index = jnp.array(list(zip(*edges)), dtype=jnp.int32)   # [2, E]
        batch = jnp.repeat(jnp.arange(num_graphs, dtype=jnp.int32),
                           nodes_per_graph)
        return edge_index, batch

    # ---- Test 1: tiny batch (fused single-kernel path) vs tiled path vs ref
    G1, NPG1 = 2, 8
    n1 = G1 * NPG1
    x1 = jax.random.normal(k_x1, (n1, IN_CH), jnp.float32)
    ei1, b1 = ring_graphs(G1, NPG1)

    out_fused = gcn_forward(params, x1, ei1, b1, G1, OUT_CH)
    out_tiled = gcn_forward(params, x1, ei1, b1, G1, OUT_CH, force_tiled=True)
    ref1 = gcn_reference(params, x1, ei1, b1, G1, OUT_CH)
    out_fused, out_tiled, ref1 = jax.block_until_ready(
        (out_fused, out_tiled, ref1))
    assert out_fused.shape == (G1, OUT_CH), out_fused.shape
    assert bool(jnp.all(jnp.isfinite(out_fused)))
    assert bool(jnp.allclose(out_fused, out_tiled, rtol=2e-2, atol=2e-2))
    assert bool(jnp.allclose(out_fused, ref1, rtol=1e-1, atol=1e-1))

    # ---- Test 2: multi-tile batch exercising block-diagonal tile skipping
    G2, NPG2 = 3, 96
    n2 = G2 * NPG2
    x2 = jax.random.normal(k_x2, (n2, IN_CH), jnp.float32)
    ei2, b2 = ring_graphs(G2, NPG2)

    out2 = gcn_forward(params, x2, ei2, b2, G2, OUT_CH, force_tiled=True)
    ref2 = gcn_reference(params, x2, ei2, b2, G2, OUT_CH)
    out2, ref2 = jax.block_until_ready((out2, ref2))
    assert out2.shape == (G2, OUT_CH), out2.shape
    assert bool(jnp.all(jnp.isfinite(out2)))
    assert bool(jnp.allclose(out2, ref2, rtol=1e-1, atol=1e-1))

    print("KERNEL_OK")
</pallas_src>

<mosaic_0001>
module attributes {stable_mosaic.version = 11 : i64} {
  func.func @fused_small_kernel(%arg0: i32, %arg1: memref<128x128xbf16, #tpu.memory_space<vmem>>, %arg2: memref<128x128xbf16, #tpu.memory_space<vmem>>, %arg3: memref<8x128xbf16, #tpu.memory_space<vmem>>, %arg4: memref<128x128xbf16, #tpu.memory_space<vmem>>, %arg5: memref<1x128xf32, #tpu.memory_space<vmem>>, %arg6: memref<1x128xf32, #tpu.memory_space<vmem>>, %arg7: memref<128x128xbf16, #tpu.memory_space<vmem>>, %arg8: memref<1x128xf32, #tpu.memory_space<vmem>>, %arg9: memref<1x128xf32, #tpu.memory_space<vmem>>, %arg10: memref<128x128xbf16, #tpu.memory_space<vmem>>, %arg11: memref<1x128xf32, #tpu.memory_space<vmem>>, %arg12: memref<1x128xf32, #tpu.memory_space<vmem>>, %arg13: memref<128x128xbf16, #tpu.memory_space<vmem>>, %arg14: memref<1x128xf32, #tpu.memory_space<vmem>>, %arg15: memref<1x128xf32, #tpu.memory_space<vmem>>, %arg16: memref<128x128xf32, #tpu.memory_space<vmem>>, %arg17: memref<1x128xf32, #tpu.memory_space<vmem>>, %arg18: memref<128x128xf32, #tpu.memory_space<vmem>>, %arg19: memref<1x128xf32, #tpu.memory_space<vmem>>, %arg20: memref<8x128xf32, #tpu.memory_space<vmem>>) attributes {dimension_semantics = [#tpu.dimension_semantics<arbitrary>], iteration_bounds = array<i64: 1>, scalar_prefetch = 0 : i64, scratch_operands = 0 : i64, tpu.core_type = #tpu.core_type<tc>, window_params = [{pipeline_mode = #tpu.pipeline_mode<synchronous>, transform_indices = @transform_0, window_bounds = array<i64: 128, 128>}, {pipeline_mode = #tpu.pipeline_mode<synchronous>, transform_indices = @transform_1, window_bounds = array<i64: 128, 128>}, {pipeline_mode = #tpu.pipeline_mode<synchronous>, transform_indices = @transform_2, window_bounds = array<i64: 8, 128>}, {pipeline_mode = #tpu.pipeline_mode<synchronous>, transform_indices = @transform_3, window_bounds = array<i64: 128, 128>}, {pipeline_mode = #tpu.pipeline_mode<synchronous>, transform_indices = @transform_4, window_bounds = array<i64: 1, 128>}, {pipeline_mode = #tpu.pipeline_mode<synchronous>, transform_indices = @transform_5, window_bounds = array<i64: 1, 128>}, {pipeline_mode = #tpu.pipeline_mode<synchronous>, transform_indices = @transform_6, window_bounds = array<i64: 128, 128>}, {pipeline_mode = #tpu.pipeline_mode<synchronous>, transform_indices = @transform_7, window_bounds = array<i64: 1, 128>}, {pipeline_mode = #tpu.pipeline_mode<synchronous>, transform_indices = @transform_8, window_bounds = array<i64: 1, 128>}, {pipeline_mode = #tpu.pipeline_mode<synchronous>, transform_indices = @transform_9, window_bounds = array<i64: 128, 128>}, {pipeline_mode = #tpu.pipeline_mode<synchronous>, transform_indices = @transform_10, window_bounds = array<i64: 1, 128>}, {pipeline_mode = #tpu.pipeline_mode<synchronous>, transform_indices = @transform_11, window_bounds = array<i64: 1, 128>}, {pipeline_mode = #tpu.pipeline_mode<synchronous>, transform_indices = @transform_12, window_bounds = array<i64: 128, 128>}, {pipeline_mode = #tpu.pipeline_mode<synchronous>, transform_indices = @transform_13, window_bounds = array<i64: 1, 128>}, {pipeline_mode = #tpu.pipeline_mode<synchronous>, transform_indices = @transform_14, window_bounds = array<i64: 1, 128>}, {pipeline_mode = #tpu.pipeline_mode<synchronous>, transform_indices = @transform_15, window_bounds = array<i64: 128, 128>}, {pipeline_mode = #tpu.pipeline_mode<synchronous>, transform_indices = @transform_16, window_bounds = array<i64: 1, 128>}, {pipeline_mode = #tpu.pipeline_mode<synchronous>, transform_indices = @transform_17, window_bounds = array<i64: 128, 128>}, {pipeline_mode = #tpu.pipeline_mode<synchronous>, transform_indices = @transform_18, window_bounds = array<i64: 1, 128>}, {pipeline_mode = #tpu.pipeline_mode<synchronous>, transform_indices = @transform_19, window_bounds = array<i64: 8, 128>}]} {
    %c0 = arith.constant 0 : index
    %c0_0 = arith.constant 0 : index
    %0 = vector.load %arg2[%c0, %c0_0] : memref<128x128xbf16, #tpu.memory_space<vmem>>, vector<128x128xbf16>
    %c0_1 = arith.constant 0 : index
    %c0_2 = arith.constant 0 : index
    %1 = vector.load %arg4[%c0_1, %c0_2] : memref<128x128xbf16, #tpu.memory_space<vmem>>, vector<128x128xbf16>
    %cst = arith.constant dense<0.000000e+00> : vector<128x128xf32>
    %2 = tpu.matmul %0, %1, %cst {dimension_numbers = #tpu.dot_dimension_numbers<[1], [0], [0], [1], [0, 0, 1, 1], [], []>} : vector<128x128xbf16>, vector<128x128xbf16>, vector<128x128xf32> -> vector<128x128xf32>
    %c0_3 = arith.constant 0 : index
    %c0_4 = arith.constant 0 : index
    %3 = vector.load %arg1[%c0_3, %c0_4] : memref<128x128xbf16, #tpu.memory_space<vmem>>, vector<128x128xbf16>
    %4 = arith.truncf %2 : vector<128x128xf32> to vector<128x128xbf16>
    %cst_5 = arith.constant dense<0.000000e+00> : vector<128x128xf32>
    %5 = tpu.matmul %3, %4, %cst_5 {dimension_numbers = #tpu.dot_dimension_numbers<[1], [0], [0], [1], [0, 0, 1, 1], [], []>} : vector<128x128xbf16>, vector<128x128xbf16>, vector<128x128xf32> -> vector<128x128xf32>
    %c0_6 = arith.constant 0 : index
    %c0_7 = arith.constant 0 : index
    %6 = vector.load %arg5[%c0_6, %c0_7] : memref<1x128xf32, #tpu.memory_space<vmem>>, vector<1x128xf32>
    %7 = vector.broadcast %6 : vector<1x128xf32> to vector<128x128xf32>
    %8 = arith.mulf %5, %7 : vector<128x128xf32>
    %c0_8 = arith.constant 0 : index
    %c0_9 = arith.constant 0 : index
    %9 = vector.load %arg6[%c0_8, %c0_9] : memref<1x128xf32, #tpu.memory_space<vmem>>, vector<1x128xf32>
    %10 = vector.broadcast %9 : vector<1x128xf32> to vector<128x128xf32>
    %11 = arith.addf %8, %10 : vector<128x128xf32>
    %cst_10 = arith.constant 0.000000e+00 : f32
    %12 = vector.broadcast %cst_10 : f32 to vector<128x128xf32>
    %13 = arith.maximumf %11, %12 : vector<128x128xf32>
    %14 = arith.truncf %13 : vector<128x128xf32> to vector<128x128xbf16>
    %c0_11 = arith.constant 0 : index
    %c0_12 = arith.constant 0 : index
    %15 = vector.load %arg7[%c0_11, %c0_12] : memref<128x128xbf16, #tpu.memory_space<vmem>>, vector<128x128xbf16>
    %cst_13 = arith.constant dense<0.000000e+00> : vector<128x128xf32>
    %16 = tpu.matmul %14, %15, %cst_13 {dimension_numbers = #tpu.dot_dimension_numbers<[1], [0], [0], [1], [0, 0, 1, 1], [], []>} : vector<128x128xbf16>, vector<128x128xbf16>, vector<128x128xf32> -> vector<128x128xf32>
    %c0_14 = arith.constant 0 : index
    %c0_15 = arith.constant 0 : index
    %17 = vector.load %arg1[%c0_14, %c0_15] : memref<128x128xbf16, #tpu.memory_space<vmem>>, vector<128x128xbf16>
    %18 = arith.truncf %16 : vector<128x128xf32> to vector<128x128xbf16>
    %cst_16 = arith.constant dense<0.000000e+00> : vector<128x128xf32>
    %19 = tpu.matmul %17, %18, %cst_16 {dimension_numbers = #tpu.dot_dimension_numbers<[1], [0], [0], [1], [0, 0, 1, 1], [], []>} : vector<128x128xbf16>, vector<128x128xbf16>, vector<128x128xf32> -> vector<128x128xf32>
    %c0_17 = arith.constant 0 : index
    %c0_18 = arith.constant 0 : index
    %20 = vector.load %arg8[%c0_17, %c0_18] : memref<1x128xf32, #tpu.memory_space<vmem>>, vector<1x128xf32>
    %21 = vector.broadcast %20 : vector<1x128xf32> to vector<128x128xf32>
    %22 = arith.mulf %19, %21 : vector<128x128xf32>
    %c0_19 = arith.constant 0 : index
    %c0_20 = arith.constant 0 : index
    %23 = vector.load %arg9[%c0_19, %c0_20] : memref<1x128xf32, #tpu.memory_space<vmem>>, vector<1x128xf32>
    %24 = vector.broadcast %23 : vector<1x128xf32> to vector<128x128xf32>
    %25 = arith.addf %22, %24 : vector<128x128xf32>
    %cst_21 = arith.constant 0.000000e+00 : f32
    %26 = vector.broadcast %cst_21 : f32 to vector<128x128xf32>
    %27 = arith.maximumf %25, %26 : vector<128x128xf32>
    %28 = arith.truncf %27 : vector<128x128xf32> to vector<128x128xbf16>
    %c0_22 = arith.constant 0 : index
    %c0_23 = arith.constant 0 : index
    %29 = vector.load %arg10[%c0_22, %c0_23] : memref<128x128xbf16, #tpu.memory_space<vmem>>, vector<128x128xbf16>
    %cst_24 = arith.constant dense<0.000000e+00> : vector<128x128xf32>
    %30 = tpu.matmul %28, %29, %cst_24 {dimension_numbers = #tpu.dot_dimension_numbers<[1], [0], [0], [1], [0, 0, 1, 1], [], []>} : vector<128x128xbf16>, vector<128x128xbf16>, vector<128x128xf32> -> vector<128x128xf32>
    %c0_25 = arith.constant 0 : index
    %c0_26 = arith.constant 0 : index
    %31 = vector.load %arg1[%c0_25, %c0_26] : memref<128x128xbf16, #tpu.memory_space<vmem>>, vector<128x128xbf16>
    %32 = arith.truncf %30 : vector<128x128xf32> to vector<128x128xbf16>
    %cst_27 = arith.constant dense<0.000000e+00> : vector<128x128xf32>
    %33 = tpu.matmul %31, %32, %cst_27 {dimension_numbers = #tpu.dot_dimension_numbers<[1], [0], [0], [1], [0, 0, 1, 1], [], []>} : vector<128x128xbf16>, vector<128x128xbf16>, vector<128x128xf32> -> vector<128x128xf32>
    %c0_28 = arith.constant 0 : index
    %c0_29 = arith.constant 0 : index
    %34 = vector.load %arg11[%c0_28, %c0_29] : memref<1x128xf32, #tpu.memory_space<vmem>>, vector<1x128xf32>
    %35 = vector.broadcast %34 : vector<1x128xf32> to vector<128x128xf32>
    %36 = arith.mulf %33, %35 : vector<128x128xf32>
    %c0_30 = arith.constant 0 : index
    %c0_31 = arith.constant 0 : index
    %37 = vector.load %arg12[%c0_30, %c0_31] : memref<1x128xf32, #tpu.memory_space<vmem>>, vector<1x128xf32>
    %38 = vector.broadcast %37 : vector<1x128xf32> to vector<128x128xf32>
    %39 = arith.addf %36, %38 : vector<128x128xf32>
    %cst_32 = arith.constant 0.000000e+00 : f32
    %40 = vector.broadcast %cst_32 : f32 to vector<128x128xf32>
    %41 = arith.maximumf %39, %40 : vector<128x128xf32>
    %42 = arith.truncf %41 : vector<128x128xf32> to vector<128x128xbf16>
    %c0_33 = arith.constant 0 : index
    %c0_34 = arith.constant 0 : index
    %43 = vector.load %arg13[%c0_33, %c0_34] : memref<128x128xbf16, #tpu.memory_space<vmem>>, vector<128x128xbf16>
    %cst_35 = arith.constant dense<0.000000e+00> : vector<128x128xf32>
    %44 = tpu.matmul %42, %43, %cst_35 {dimension_numbers = #tpu.dot_dimension_numbers<[1], [0], [0], [1], [0, 0, 1, 1], [], []>} : vector<128x128xbf16>, vector<128x128xbf16>, vector<128x128xf32> -> vector<128x128xf32>
    %c0_36 = arith.constant 0 : index
    %c0_37 = arith.constant 0 : index
    %45 = vector.load %arg1[%c0_36, %c0_37] : memref<128x128xbf16, #tpu.memory_space<vmem>>, vector<128x128xbf16>
    %46 = arith.truncf %44 : vector<128x128xf32> to vector<128x128xbf16>
    %cst_38 = arith.constant dense<0.000000e+00> : vector<128x128xf32>
    %47 = tpu.matmul %45, %46, %cst_38 {dimension_numbers = #tpu.dot_dimension_numbers<[1], [0], [0], [1], [0, 0, 1, 1], [], []>} : vector<128x128xbf16>, vector<128x128xbf16>, vector<128x128xf32> -> vector<128x128xf32>
    %c0_39 = arith.constant 0 : index
    %c0_40 = arith.constant 0 : index
    %48 = vector.load %arg14[%c0_39, %c0_40] : memref<1x128xf32, #tpu.memory_space<vmem>>, vector<1x128xf32>
    %49 = vector.broadcast %48 : vector<1x128xf32> to vector<128x128xf32>
    %50 = arith.mulf %47, %49 : vector<128x128xf32>
    %c0_41 = arith.constant 0 : index
    %c0_42 = arith.constant 0 : index
    %51 = vector.load %arg15[%c0_41, %c0_42] : memref<1x128xf32, #tpu.memory_space<vmem>>, vector<1x128xf32>
    %52 = vector.broadcast %51 : vector<1x128xf32> to vector<128x128xf32>
    %53 = arith.addf %50, %52 : vector<128x128xf32>
    %cst_43 = arith.constant 0.000000e+00 : f32
    %54 = vector.broadcast %cst_43 : f32 to vector<128x128xf32>
    %55 = arith.maximumf %53, %54 : vector<128x128xf32>
    %56 = arith.truncf %55 : vector<128x128xf32> to vector<128x128xbf16>
    %c0_44 = arith.constant 0 : index
    %c0_45 = arith.constant 0 : index
    %57 = vector.load %arg3[%c0_44, %c0_45] : memref<8x128xbf16, #tpu.memory_space<vmem>>, vector<8x128xbf16>
    %cst_46 = arith.constant dense<0.000000e+00> : vector<8x128xf32>
    %58 = tpu.matmul %57, %56, %cst_46 {dimension_numbers = #tpu.dot_dimension_numbers<[1], [0], [0], [1], [0, 0, 1, 1], [], []>} : vector<8x128xbf16>, vector<128x128xbf16>, vector<8x128xf32> -> vector<8x128xf32>
    %c0_47 = arith.constant 0 : index
    %c0_48 = arith.constant 0 : index
    %59 = vector.load %arg16[%c0_47, %c0_48] : memref<128x128xf32, #tpu.memory_space<vmem>>, vector<128x128xf32>
    %cst_49 = arith.constant dense<0.000000e+00> : vector<8x128xf32>
    %60 = tpu.matmul %58, %59, %cst_49 {dimension_numbers = #tpu.dot_dimension_numbers<[1], [0], [0], [1], [0, 0, 1, 1], [], []>} : vector<8x128xf32>, vector<128x128xf32>, vector<8x128xf32> -> vector<8x128xf32>
    %c0_50 = arith.constant 0 : index
    %c0_51 = arith.constant 0 : index
    %61 = vector.load %arg17[%c0_50, %c0_51] : memref<1x128xf32, #tpu.memory_space<vmem>>, vector<1x128xf32>
    %62 = vector.broadcast %61 : vector<1x128xf32> to vector<8x128xf32>
    %63 = arith.addf %60, %62 : vector<8x128xf32>
    %cst_52 = arith.constant 0.000000e+00 : f32
    %64 = vector.broadcast %cst_52 : f32 to vector<8x128xf32>
    %65 = arith.maximumf %63, %64 : vector<8x128xf32>
    %c0_53 = arith.constant 0 : index
    %c0_54 = arith.constant 0 : index
    %66 = vector.load %arg18[%c0_53, %c0_54] : memref<128x128xf32, #tpu.memory_space<vmem>>, vector<128x128xf32>
    %cst_55 = arith.constant dense<0.000000e+00> : vector<8x128xf32>
    %67 = tpu.matmul %65, %66, %cst_55 {dimension_numbers = #tpu.dot_dimension_numbers<[1], [0], [0], [1], [0, 0, 1, 1], [], []>} : vector<8x128xf32>, vector<128x128xf32>, vector<8x128xf32> -> vector<8x128xf32>
    %c0_56 = arith.constant 0 : index
    %c0_57 = arith.constant 0 : index
    %68 = vector.load %arg19[%c0_56, %c0_57] : memref<1x128xf32, #tpu.memory_space<vmem>>, vector<1x128xf32>
    %69 = vector.broadcast %68 : vector<1x128xf32> to vector<8x128xf32>
    %70 = arith.addf %67, %69 : vector<8x128xf32>
    %c0_58 = arith.constant 0 : index
    %c0_59 = arith.constant 0 : index
    %71 = vector.load %arg20[%c0_58, %c0_59] : memref<8x128xf32, #tpu.memory_space<vmem>>, vector<8x128xf32>
    tpu.vector_store %arg20[%c0_58, %c0_59], %70 {strides = array<i32>} : memref<8x128xf32, #tpu.memory_space<vmem>>, vector<8x128xf32>,
    return
  }
  func.func @transform_0(%arg0: i32) -> (i32, i32) {
    %c0_i32 = arith.constant 0 : i32
    %c0_i32_0 = arith.constant 0 : i32
    %c0_i32_1 = arith.constant 0 : i32
    return %c0_i32, %c0_i32_0 : i32, i32
  }
  func.func @transform_1(%arg0: i32) -> (i32, i32) {
    %c0_i32 = arith.constant 0 : i32
    %c0_i32_0 = arith.constant 0 : i32
    %c0_i32_1 = arith.constant 0 : i32
    return %c0_i32, %c0_i32_0 : i32, i32
  }
  func.func @transform_2(%arg0: i32) -> (i32, i32) {
    %c0_i32 = arith.constant 0 : i32
    %c0_i32_0 = arith.constant 0 : i32
    %c0_i32_1 = arith.constant 0 : i32
    return %c0_i32, %c0_i32_0 : i32, i32
  }
  func.func @transform_3(%arg0: i32) -> (i32, i32) {
    %c0_i32 = arith.constant 0 : i32
    %c0_i32_0 = arith.constant 0 : i32
    %c0_i32_1 = arith.constant 0 : i32
    return %c0_i32, %c0_i32_0 : i32, i32
  }
  func.func @transform_4(%arg0: i32) -> (i32, i32) {
    %c0_i32 = arith.constant 0 : i32
    %c0_i32_0 = arith.constant 0 : i32
    %c0_i32_1 = arith.constant 0 : i32
    return %c0_i32, %c0_i32_0 : i32, i32
  }
  func.func @transform_5(%arg0: i32) -> (i32, i32) {
    %c0_i32 = arith.constant 0 : i32
    %c0_i32_0 = arith.constant 0 : i32
    %c0_i32_1 = arith.constant 0 : i32
    return %c0_i32, %c0_i32_0 : i32, i32
  }
  func.func @transform_6(%arg0: i32) -> (i32, i32) {
    %c0_i32 = arith.constant 0 : i32
    %c0_i32_0 = arith.constant 0 : i32
    %c0_i32_1 = arith.constant 0 : i32
    return %c0_i32, %c0_i32_0 : i32, i32
  }
  func.func @transform_7(%arg0: i32) -> (i32, i32) {
    %c0_i32 = arith.constant 0 : i32
    %c0_i32_0 = arith.constant 0 : i32
    %c0_i32_1 = arith.constant 0 : i32
    return %c0_i32, %c0_i32_0 : i32, i32
  }
  func.func @transform_8(%arg0: i32) -> (i32, i32) {
    %c0_i32 = arith.constant 0 : i32
    %c0_i32_0 = arith.constant 0 : i32
    %c0_i32_1 = arith.constant 0 : i32
    return %c0_i32, %c0_i32_0 : i32, i32
  }
  func.func @transform_9(%arg0: i32) -> (i32, i32) {
    %c0_i32 = arith.constant 0 : i32
    %c0_i32_0 = arith.constant 0 : i32
    %c0_i32_1 = arith.constant 0 : i32
    return %c0_i32, %c0_i32_0 : i32, i32
  }
  func.func @transform_10(%arg0: i32) -> (i32, i32) {
    %c0_i32 = arith.constant 0 : i32
    %c0_i32_0 = arith.constant 0 : i32
    %c0_i32_1 = arith.constant 0 : i32
    return %c0_i32, %c0_i32_0 : i32, i32
  }
  func.func @transform_11(%arg0: i32) -> (i32, i32) {
    %c0_i32 = arith.constant 0 : i32
    %c0_i32_0 = arith.constant 0 : i32
    %c0_i32_1 = arith.constant 0 : i32
    return %c0_i32, %c0_i32_0 : i32, i32
  }
  func.func @transform_12(%arg0: i32) -> (i32, i32) {
    %c0_i32 = arith.constant 0 : i32
    %c0_i32_0 = arith.constant 0 : i32
    %c0_i32_1 = arith.constant 0 : i32
    return %c0_i32, %c0_i32_0 : i32, i32
  }
  func.func @transform_13(%arg0: i32) -> (i32, i32) {
    %c0_i32 = arith.constant 0 : i32
    %c0_i32_0 = arith.constant 0 : i32
    %c0_i32_1 = arith.constant 0 : i32
    return %c0_i32, %c0_i32_0 : i32, i32
  }
  func.func @transform_14(%arg0: i32) -> (i32, i32) {
    %c0_i32 = arith.constant 0 : i32
    %c0_i32_0 = arith.constant 0 : i32
    %c0_i32_1 = arith.constant 0 : i32
    return %c0_i32, %c0_i32_0 : i32, i32
  }
  func.func @transform_15(%arg0: i32) -> (i32, i32) {
    %c0_i32 = arith.constant 0 : i32
    %c0_i32_0 = arith.constant 0 : i32
    %c0_i32_1 = arith.constant 0 : i32
    return %c0_i32, %c0_i32_0 : i32, i32
  }
  func.func @transform_16(%arg0: i32) -> (i32, i32) {
    %c0_i32 = arith.constant 0 : i32
    %c0_i32_0 = arith.constant 0 : i32
    %c0_i32_1 = arith.constant 0 : i32
    return %c0_i32, %c0_i32_0 : i32, i32
  }
  func.func @transform_17(%arg0: i32) -> (i32, i32) {
    %c0_i32 = arith.constant 0 : i32
    %c0_i32_0 = arith.constant 0 : i32
    %c0_i32_1 = arith.constant 0 : i32
    return %c0_i32, %c0_i32_0 : i32, i32
  }
  func.func @transform_18(%arg0: i32) -> (i32, i32) {
    %c0_i32 = arith.constant 0 : i32
    %c0_i32_0 = arith.constant 0 : i32
    %c0_i32_1 = arith.constant 0 : i32
    return %c0_i32, %c0_i32_0 : i32, i32
  }
  func.func @transform_19(%arg0: i32) -> (i32, i32) {
    %c0_i32 = arith.constant 0 : i32
    %c0_i32_0 = arith.constant 0 : i32
    %c0_i32_1 = arith.constant 0 : i32
    return %c0_i32, %c0_i32_0 : i32, i32
  }
}

</mosaic_0001>

<llo_original>
// kernel: tpu_custom_call.1
$region0: #{tpu_custom_call.1}
  #allocation0 [shape = 'u32[]', space=smem, size = 0x4, offset = 0x4, fixed_abs, tag = 'smem constant byte address 0x4 - core index']
  #allocation1 [shape = 'u32[72,128]{1,0:T(1,128)}', space=vmem, size = 0x9000, scoped, tag = 'internal scratch']
  %s0 = inlined_call_operand.hbm [shape: bf16[128,128], index: 0, kind: input, shape index: {}]
  %s1 = inlined_call_operand.hbm [shape: bf16[128,128], index: 1, kind: input, shape index: {}]
  %s2 = inlined_call_operand.hbm [shape: bf16[8,128], index: 2, kind: input, shape index: {}]
  %s3 = inlined_call_operand.hbm [shape: bf16[128,128], index: 3, kind: input, shape index: {}]
  %s4 = inlined_call_operand.vmem [shape: f32[1,128], index: 4, kind: input, shape index: {}]
  %s5 = inlined_call_operand.vmem [shape: f32[1,128], index: 5, kind: input, shape index: {}]
  %s6 = inlined_call_operand.hbm [shape: bf16[128,128], index: 6, kind: input, shape index: {}]
  %s7 = inlined_call_operand.vmem [shape: f32[1,128], index: 7, kind: input, shape index: {}]
  %s8 = inlined_call_operand.vmem [shape: f32[1,128], index: 8, kind: input, shape index: {}]
  %s9 = inlined_call_operand.hbm [shape: bf16[128,128], index: 9, kind: input, shape index: {}]
  %s10 = inlined_call_operand.vmem [shape: f32[1,128], index: 10, kind: input, shape index: {}]
  %s11 = inlined_call_operand.vmem [shape: f32[1,128], index: 11, kind: input, shape index: {}]
  %s12 = inlined_call_operand.hbm [shape: bf16[128,128], index: 12, kind: input, shape index: {}]
  %s13 = inlined_call_operand.vmem [shape: f32[1,128], index: 13, kind: input, shape index: {}]
  %s14 = inlined_call_operand.vmem [shape: f32[1,128], index: 14, kind: input, shape index: {}]
  %s15 = inlined_call_operand.hbm [shape: f32[128,128], index: 15, kind: input, shape index: {}]
  %s16 = inlined_call_operand.vmem [shape: f32[1,128], index: 16, kind: input, shape index: {}]
  %s17 = inlined_call_operand.hbm [shape: f32[128,128], index: 17, kind: input, shape index: {}]
  %s18 = inlined_call_operand.vmem [shape: f32[1,128], index: 18, kind: input, shape index: {}]
  %s19 = inlined_call_operand.hbm [shape: f32[8,128], index: 19, kind: output, shape index: {}]
  %s20 = sld [smem:[#allocation0]]
  $region122: #{tpu_custom_call.1} parent=0
    _
  %s22 = ssub.s32 1, %s20
  %s23 = scalar_select 0, %s22, %s20
  $region1: #{tpu_custom_call.1} parent=0
    #allocation2 [shape = 'u8[32768]{0}', space=vmem, size = 0x8000, scoped, tag = 'input window, operand 0, single buffered']
    #allocation3 [shape = 's32[1]{0}', space=sflag, size = 0x4, scoped, tag = 'scoped memory for tpu_custom_call.1']
    #allocation4 [shape = 's32[1]{0}', space=sflag, size = 0x4, scoped, tag = 'scoped memory for tpu_custom_call.1']
    #allocation5 [shape = 'u8[32768]{0}', space=vmem, size = 0x8000, scoped, tag = 'input window, operand 1, single buffered']
    #allocation6 [shape = 's32[1]{0}', space=sflag, size = 0x4, scoped, tag = 'scoped memory for tpu_custom_call.1']
    #allocation7 [shape = 'u8[2048]{0}', space=vmem, size = 0x800, scoped, tag = 'input window, operand 2, single buffered']
    #allocation8 [shape = 'u8[32768]{0}', space=vmem, size = 0x8000, scoped, tag = 'input window, operand 3, single buffered']
    #allocation9 [shape = 's32[1]{0}', space=sflag, size = 0x4, scoped, tag = 'scoped memory for tpu_custom_call.1']
    #allocation10 [shape = 'u8[32768]{0}', space=vmem, size = 0x8000, scoped, tag = 'input window, operand 6, single buffered']
    #allocation11 [shape = 'u8[32768]{0}', space=vmem, size = 0x8000, scoped, tag = 'input window, operand 9, single buffered']
    #allocation12 [shape = 's32[1]{0}', space=sflag, size = 0x4, scoped, tag = 'scoped memory for tpu_custom_call.1']
    #allocation13 [shape = 'u8[32768]{0}', space=vmem, size = 0x8000, scoped, tag = 'input window, operand 12, single buffered']
    #allocation14 [shape = 'u8[65536]{0}', space=vmem, size = 0x10000, scoped, tag = 'input window, operand 15, single buffered']
    #allocation15 [shape = 's32[1]{0}', space=sflag, size = 0x4, scoped, tag = 'scoped memory for tpu_custom_call.1']
    #allocation16 [shape = 'u8[65536]{0}', space=vmem, size = 0x10000, scoped, tag = 'input window, operand 17, single buffered']
    #allocation17 [shape = 'u8[4096]{0}', space=vmem, size = 0x1000, scoped, tag = 'output window, operand 0, single buffered']
    %24 = vsyncpa [#allocation3], 0
    %25 = vsyncpa [#allocation6], 0
    %26 = vsyncpa [#allocation9], 0
    %27 = vsyncpa [#allocation12], 0
    %28 = vsyncpa [#allocation15], 0
    %29 = vsyncpa [#allocation4], 0
    // Predicated region
    $region2: #{tpu_custom_call.1} parent=1 // pred_check
      _
    $region3: #{tpu_custom_call.1} parent=1 // pred_check_branch
      %31 = sbr.rel (0) target = $region5
    $region4: #{tpu_custom_call.1} parent=1 // pred_region
      %33 = vsyncadd [#allocation3], 0
      %s34 = sshll.u32 %s0, 4
      %s35 = int_to_ptr.hbm [resolvable:$true] %s34
      %s36 = sshll.u32 [#allocation2], 4
      %s37 = int_to_ptr.vmem [resolvable:$true] %s36
      %42 = dma.hbm_to_vmem [thread:$0]  %s35, 1024, %s37, [#allocation3], 64, 64, 4
    $region5: #{tpu_custom_call.1} parent=1 // pred_fallthru
      _
    // Predicated region
    $region6: #{tpu_custom_call.1} parent=1 // pred_check
      _
    $region7: #{tpu_custom_call.1} parent=1 // pred_check_branch
      %44 = sbr.rel (0) target = $region9
    $region8: #{tpu_custom_call.1} parent=1 // pred_region
      %46 = vsyncadd [#allocation6], 0
      %s47 = sshll.u32 %s1, 4
      %s48 = int_to_ptr.hbm [resolvable:$true] %s47
      %s49 = sshll.u32 [#allocation5], 4
      %s50 = int_to_ptr.vmem [resolvable:$true] %s49
      %55 = dma.hbm_to_vmem [thread:$0]  %s48, 1024, %s50, [#allocation6], 64, 64, 4
    $region9: #{tpu_custom_call.1} parent=1 // pred_fallthru
      _
    // Predicated region
    $region10: #{tpu_custom_call.1} parent=1 // pred_check
      _
    $region11: #{tpu_custom_call.1} parent=1 // pred_check_branch
      %57 = sbr.rel (0) target = $region13
    $region12: #{tpu_custom_call.1} parent=1 // pred_region
      %59 = vsyncadd [#allocation6], 0
      %s61 = sshll.u32 %s2, 4
      %s62 = int_to_ptr.hbm [resolvable:$true] %s61
      %s63 = sshll.u32 [#allocation7], 4
      %s64 = int_to_ptr.vmem [resolvable:$true] %s63
      %66 = dma.hbm_to_vmem [thread:$0]  %s62, 64, %s64, [#allocation6]
    $region13: #{tpu_custom_call.1} parent=1 // pred_fallthru
      _
    // Predicated region
    $region14: #{tpu_custom_call.1} parent=1 // pred_check
      _
    $region15: #{tpu_custom_call.1} parent=1 // pred_check_branch
      %68 = sbr.rel (0) target = $region17
    $region16: #{tpu_custom_call.1} parent=1 // pred_region
      %70 = vsyncadd [#allocation9], 0
      %s71 = sshll.u32 %s3, 4
      %s72 = int_to_ptr.hbm [resolvable:$true] %s71
      %s73 = sshll.u32 [#allocation8], 4
      %s74 = int_to_ptr.vmem [resolvable:$true] %s73
      %79 = dma.hbm_to_vmem [thread:$0]  %s72, 1024, %s74, [#allocation9], 64, 64, 4
    $region17: #{tpu_custom_call.1} parent=1 // pred_fallthru
      _
    // Predicated region
    $region18: #{tpu_custom_call.1} parent=1 // pred_check
      _
    $region19: #{tpu_custom_call.1} parent=1 // pred_check_branch
      %81 = sbr.rel (0) target = $region21
    $region20: #{tpu_custom_call.1} parent=1 // pred_region
      _
    $region21: #{tpu_custom_call.1} parent=1 // pred_fallthru
      _
    // Predicated region
    $region22: #{tpu_custom_call.1} parent=1 // pred_check
      _
    $region23: #{tpu_custom_call.1} parent=1 // pred_check_branch
      %83 = sbr.rel (0) target = $region25
    $region24: #{tpu_custom_call.1} parent=1 // pred_region
      _
    $region25: #{tpu_custom_call.1} parent=1 // pred_fallthru
      _
    // Predicated region
    $region26: #{tpu_custom_call.1} parent=1 // pred_check
      _
    $region27: #{tpu_custom_call.1} parent=1 // pred_check_branch
      %85 = sbr.rel (0) target = $region29
    $region28: #{tpu_custom_call.1} parent=1 // pred_region
      %87 = vsyncadd [#allocation9], 0
      %s88 = sshll.u32 %s6, 4
      %s89 = int_to_ptr.hbm [resolvable:$true] %s88
      %s90 = sshll.u32 [#allocation10], 4
      %s91 = int_to_ptr.vmem [resolvable:$true] %s90
      %96 = dma.hbm_to_vmem [thread:$0]  %s89, 1024, %s91, [#allocation9], 64, 64, 4
    $region29: #{tpu_custom_call.1} parent=1 // pred_fallthru
      _
    // Predicated region
    $region30: #{tpu_custom_call.1} parent=1 // pred_check
      _
    $region31: #{tpu_custom_call.1} parent=1 // pred_check_branch
      %98 = sbr.rel (0) target = $region33
    $region32: #{tpu_custom_call.1} parent=1 // pred_region
      _
    $region33: #{tpu_custom_call.1} parent=1 // pred_fallthru
      _
    // Predicated region
    $region34: #{tpu_custom_call.1} parent=1 // pred_check
      _
    $region35: #{tpu_custom_call.1} parent=1 // pred_check_branch
      %100 = sbr.rel (0) target = $region37
    $region36: #{tpu_custom_call.1} parent=1 // pred_region
      _
    $region37: #{tpu_custom_call.1} parent=1 // pred_fallthru
      _
    // Predicated region
    $region38: #{tpu_custom_call.1} parent=1 // pred_check
      _
    $region39: #{tpu_custom_call.1} parent=1 // pred_check_branch
      %102 = sbr.rel (0) target = $region41
    $region40: #{tpu_custom_call.1} parent=1 // pred_region
      %104 = vsyncadd [#allocation12], 0
      %s105 = sshll.u32 %s9, 4
      %s106 = int_to_ptr.hbm [resolvable:$true] %s105
      %s107 = sshll.u32 [#allocation11], 4
      %s108 = int_to_ptr.vmem [resolvable:$true] %s107
      %113 = dma.hbm_to_vmem [thread:$0]  %s106, 1024, %s108, [#allocation12], 64, 64, 4
    $region41: #{tpu_custom_call.1} parent=1 // pred_fallthru
      _
    // Predicated region
    $region42: #{tpu_custom_call.1} parent=1 // pred_check
      _
    $region43: #{tpu_custom_call.1} parent=1 // pred_check_branch
      %115 = sbr.rel (0) target = $region45
    $region44: #{tpu_custom_call.1} parent=1 // pred_region
      _
    $region45: #{tpu_custom_call.1} parent=1 // pred_fallthru
      _
    // Predicated region
    $region46: #{tpu_custom_call.1} parent=1 // pred_check
      _
    $region47: #{tpu_custom_call.1} parent=1 // pred_check_branch
      %117 = sbr.rel (0) target = $region49
    $region48: #{tpu_custom_call.1} parent=1 // pred_region
      _
    $region49: #{tpu_custom_call.1} parent=1 // pred_fallthru
      _
    // Predicated region
    $region50: #{tpu_custom_call.1} parent=1 // pred_check
      _
    $region51: #{tpu_custom_call.1} parent=1 // pred_check_branch
      %119 = sbr.rel (0) target = $region53
    $region52: #{tpu_custom_call.1} parent=1 // pred_region
      %121 = vsyncadd [#allocation12], 0
      %s122 = sshll.u32 %s12, 4
      %s123 = int_to_ptr.hbm [resolvable:$true] %s122
      %s124 = sshll.u32 [#allocation13], 4
      %s125 = int_to_ptr.vmem [resolvable:$true] %s124
      %130 = dma.hbm_to_vmem [thread:$0]  %s123, 1024, %s125, [#allocation12], 64, 64, 4
    $region53: #{tpu_custom_call.1} parent=1 // pred_fallthru
      _
    // Predicated region
    $region54: #{tpu_custom_call.1} parent=1 // pred_check
      _
    $region55: #{tpu_custom_call.1} parent=1 // pred_check_branch
      %132 = sbr.rel (0) target = $region57
    $region56: #{tpu_custom_call.1} parent=1 // pred_region
      _
    $region57: #{tpu_custom_call.1} parent=1 // pred_fallthru
      _
    // Predicated region
    $region58: #{tpu_custom_call.1} parent=1 // pred_check
      _
    $region59: #{tpu_custom_call.1} parent=1 // pred_check_branch
      %134 = sbr.rel (0) target = $region61
    $region60: #{tpu_custom_call.1} parent=1 // pred_region
      _
    $region61: #{tpu_custom_call.1} parent=1 // pred_fallthru
      _
    // Predicated region
    $region62: #{tpu_custom_call.1} parent=1 // pred_check
      _
    $region63: #{tpu_custom_call.1} parent=1 // pred_check_branch
      %136 = sbr.rel (0) target = $region65
    $region64: #{tpu_custom_call.1} parent=1 // pred_region
      %138 = vsyncadd [#allocation15], 0
      %s139 = sshll.u32 %s15, 4
      %s140 = int_to_ptr.hbm [resolvable:$true] %s139
      %s141 = sshll.u32 [#allocation14], 4
      %s142 = int_to_ptr.vmem [resolvable:$true] %s141
      %147 = dma.hbm_to_vmem [thread:$0]  %s140, 2048, %s142, [#allocation15], 128, 128, 8
    $region65: #{tpu_custom_call.1} parent=1 // pred_fallthru
      _
    // Predicated region
    $region66: #{tpu_custom_call.1} parent=1 // pred_check
      _
    $region67: #{tpu_custom_call.1} parent=1 // pred_check_branch
      %149 = sbr.rel (0) target = $region69
    $region68: #{tpu_custom_call.1} parent=1 // pred_region
      _
    $region69: #{tpu_custom_call.1} parent=1 // pred_fallthru
      _
    // Predicated region
    $region70: #{tpu_custom_call.1} parent=1 // pred_check
      _
    $region71: #{tpu_custom_call.1} parent=1 // pred_check_branch
      %151 = sbr.rel (0) target = $region73
    $region72: #{tpu_custom_call.1} parent=1 // pred_region
      %153 = vsyncadd [#allocation15], 0
      %s154 = sshll.u32 %s17, 4
      %s155 = int_to_ptr.hbm [resolvable:$true] %s154
      %s156 = sshll.u32 [#allocation16], 4
      %s157 = int_to_ptr.vmem [resolvable:$true] %s156
      %162 = dma.hbm_to_vmem [thread:$0]  %s155, 2048, %s157, [#allocation15], 128, 128, 8
    $region73: #{tpu_custom_call.1} parent=1 // pred_fallthru
      _
    // Predicated region
    $region74: #{tpu_custom_call.1} parent=1 // pred_check
      _
    $region75: #{tpu_custom_call.1} parent=1 // pred_check_branch
      %164 = sbr.rel (0) target = $region77
    $region76: #{tpu_custom_call.1} parent=1 // pred_region
      _
    $region77: #{tpu_custom_call.1} parent=1 // pred_fallthru
      _
    // Predicated region
    $region78: #{tpu_custom_call.1} parent=1 // pred_check
      _
    $region79: #{tpu_custom_call.1} parent=1 // pred_check_branch
      %166 = sbr.rel (0) target = $region81
    $region80: #{tpu_custom_call.1} parent=1 // pred_region
      %168 = dma.done [#allocation3], 1024
    $region81: #{tpu_custom_call.1} parent=1 // pred_fallthru
      _
    // Predicated region
    $region82: #{tpu_custom_call.1} parent=1 // pred_check
      _
    $region83: #{tpu_custom_call.1} parent=1 // pred_check_branch
      %170 = sbr.rel (0) target = $region85
    $region84: #{tpu_custom_call.1} parent=1 // pred_region
      %172 = dma.done [#allocation6], 1024
    $region85: #{tpu_custom_call.1} parent=1 // pred_fallthru
      _
    // Predicated region
    $region86: #{tpu_custom_call.1} parent=1 // pred_check
      _
    $region87: #{tpu_custom_call.1} parent=1 // pred_check_branch
      %174 = sbr.rel (0) target = $region89
    $region88: #{tpu_custom_call.1} parent=1 // pred_region
      %176 = dma.done [#allocation6], 64
    $region89: #{tpu_custom_call.1} parent=1 // pred_fallthru
      _
    // Predicated region
    $region90: #{tpu_custom_call.1} parent=1 // pred_check
      _
    $region91: #{tpu_custom_call.1} parent=1 // pred_check_branch
      %178 = sbr.rel (0) target = $region93
    $region92: #{tpu_custom_call.1} parent=1 // pred_region
      %180 = dma.done [#allocation9], 1024
    $region93: #{tpu_custom_call.1} parent=1 // pred_fallthru
      _
    // Predicated region
    $region94: #{tpu_custom_call.1} parent=1 // pred_check
      _
    $region95: #{tpu_custom_call.1} parent=1 // pred_check_branch
      %182 = sbr.rel (0) target = $region97
    $region96: #{tpu_custom_call.1} parent=1 // pred_region
      %184 = dma.done [#allocation9], 1024
    $region97: #{tpu_custom_call.1} parent=1 // pred_fallthru
      _
    // Predicated region
    $region98: #{tpu_custom_call.1} parent=1 // pred_check
      _
    $region99: #{tpu_custom_call.1} parent=1 // pred_check_branch
      %186 = sbr.rel (0) target = $region101
    $region100: #{tpu_custom_call.1} parent=1 // pred_region
      %188 = dma.done [#allocation12], 1024
    $region101: #{tpu_custom_call.1} parent=1 // pred_fallthru
      _
    // Predicated region
    $region102: #{tpu_custom_call.1} parent=1 // pred_check
      _
    $region103: #{tpu_custom_call.1} parent=1 // pred_check_branch
      %190 = sbr.rel (0) target = $region105
    $region104: #{tpu_custom_call.1} parent=1 // pred_region
      %192 = dma.done [#allocation12], 1024
    $region105: #{tpu_custom_call.1} parent=1 // pred_fallthru
      _
    // Predicated region
    $region106: #{tpu_custom_call.1} parent=1 // pred_check
      _
    $region107: #{tpu_custom_call.1} parent=1 // pred_check_branch
      %194 = sbr.rel (0) target = $region109
    $region108: #{tpu_custom_call.1} parent=1 // pred_region
      %196 = dma.done [#allocation15], 2048
    $region109: #{tpu_custom_call.1} parent=1 // pred_fallthru
      _
    // Predicated region
    $region110: #{tpu_custom_call.1} parent=1 // pred_check
      _
    $region111: #{tpu_custom_call.1} parent=1 // pred_check_branch
      %198 = sbr.rel (0) target = $region113
    $region112: #{tpu_custom_call.1} parent=1 // pred_region
      %200 = dma.done [#allocation15], 2048
    $region113: #{tpu_custom_call.1} parent=1 // pred_fallthru
      _
    %v201 = vld [vmem:[#allocation5] sm:$0xf]
    %v202 = vld [vmem:[#allocation5 + $0x4] sm:$0xf]
    %v203 = vld [vmem:[#allocation5 + $0x8] sm:$0xf]
    %v204 = vld [vmem:[#allocation5 + $0xc] sm:$0xf]
    %v205 = vld [vmem:[#allocation5 + $0x10] sm:$0xf]
    %v206 = vld [vmem:[#allocation5 + $0x14] sm:$0xf]
    %v207 = vld [vmem:[#allocation5 + $0x18] sm:$0xf]
    %v208 = vld [vmem:[#allocation5 + $0x1c] sm:$0xf]
    %v209 = vld [vmem:[#allocation5 + $0x20] sm:$0xf]
    %v210 = vld [vmem:[#allocation5 + $0x24] sm:$0xf]
    %v211 = vld [vmem:[#allocation5 + $0x28] sm:$0xf]
    %v212 = vld [vmem:[#allocation5 + $0x2c] sm:$0xf]
    %v213 = vld [vmem:[#allocation5 + $0x30] sm:$0xf]
    %v214 = vld [vmem:[#allocation5 + $0x34] sm:$0xf]
    %v215 = vld [vmem:[#allocation5 + $0x38] sm:$0xf]
    %v216 = vld [vmem:[#allocation5 + $0x3c] sm:$0xf]
    %v217 = vld [vmem:[#allocation8] sm:$0xf]
    %v218 = vld [vmem:[#allocation8 + $0x4] sm:$0xf]
    %v219 = vld [vmem:[#allocation8 + $0x8] sm:$0xf]
    %v220 = vld [vmem:[#allocation8 + $0xc] sm:$0xf]
    %v221 = vld [vmem:[#allocation8 + $0x10] sm:$0xf]
    %v222 = vld [vmem:[#allocation8 + $0x14] sm:$0xf]
    %v223 = vld [vmem:[#allocation8 + $0x18] sm:$0xf]
    %v224 = vld [vmem:[#allocation8 + $0x1c] sm:$0xf]
    %v225 = vld [vmem:[#allocation8 + $0x20] sm:$0xf]
    %v226 = vld [vmem:[#allocation8 + $0x24] sm:$0xf]
    %v227 = vld [vmem:[#allocation8 + $0x28] sm:$0xf]
    %v228 = vld [vmem:[#allocation8 + $0x2c] sm:$0xf]
    %v229 = vld [vmem:[#allocation8 + $0x30] sm:$0xf]
    %v230 = vld [vmem:[#allocation8 + $0x34] sm:$0xf]
    %v231 = vld [vmem:[#allocation8 + $0x38] sm:$0xf]
    %v232 = vld [vmem:[#allocation8 + $0x3c] sm:$0xf]
    %v249 = vunpack.c.l.b16 %v201
    %v250 = vunpack.c.l.b16 %v202
    %v251 = vunpack.c.l.b16 %v203
    %v252 = vunpack.c.l.b16 %v204
    %v253 = vunpack.c.l.b16 %v205
    %v254 = vunpack.c.l.b16 %v206
    %v255 = vunpack.c.l.b16 %v207
    %v256 = vunpack.c.l.b16 %v208
    %v257 = vunpack.c.l.b16 %v209
    %v258 = vunpack.c.l.b16 %v210
    %v259 = vunpack.c.l.b16 %v211
    %v260 = vunpack.c.l.b16 %v212
    %v261 = vunpack.c.l.b16 %v213
    %v262 = vunpack.c.l.b16 %v214
    %v263 = vunpack.c.l.b16 %v215
    %v264 = vunpack.c.l.b16 %v216
    %v265 = vpack.c.b16 %v250, %v249
    %v266 = vpack.c.b16 %v252, %v251
    %v267 = vpack.c.b16 %v254, %v253
    %v268 = vpack.c.b16 %v256, %v255
    %v269 = vpack.c.b16 %v258, %v257
    %v270 = vpack.c.b16 %v260, %v259
    %v271 = vpack.c.b16 %v262, %v261
    %v272 = vpack.c.b16 %v264, %v263
    %v297 = vunpack.c.l.b16 %v217
    %v298 = vunpack.c.l.b16 %v218
    %v299 = vunpack.c.l.b16 %v219
    %v300 = vunpack.c.l.b16 %v220
    %v301 = vunpack.c.l.b16 %v221
    %v302 = vunpack.c.l.b16 %v222
    %v303 = vunpack.c.l.b16 %v223
    %v304 = vunpack.c.l.b16 %v224
    %v305 = vunpack.c.l.b16 %v225
    %v306 = vunpack.c.l.b16 %v226
    %v307 = vunpack.c.l.b16 %v227
    %v308 = vunpack.c.l.b16 %v228
    %v309 = vunpack.c.l.b16 %v229
    %v310 = vunpack.c.l.b16 %v230
    %v311 = vunpack.c.l.b16 %v231
    %v312 = vunpack.c.l.b16 %v232
    %v313 = vpack.c.b16 %v298, %v297
    %v314 = vpack.c.b16 %v300, %v299
    %v315 = vpack.c.b16 %v302, %v301
    %v316 = vpack.c.b16 %v304, %v303
    %v317 = vpack.c.b16 %v306, %v305
    %v318 = vpack.c.b16 %v308, %v307
    %v319 = vpack.c.b16 %v310, %v309
    %v320 = vpack.c.b16 %v312, %v311
    %329 = vmatpush.bf16.msra.mxu0 %v320
    %330 = vmatpush.bf16.msra.mxu0 %v319
    %331 = vmatpush.bf16.msra.mxu0 %v318
    %332 = vmatpush.bf16.msra.mxu0 %v317
    %333 = vmatpush.bf16.msra.mxu0 %v316
    %334 = vmatpush.bf16.msra.mxu0 %v315
    %335 = vmatpush.bf16.msra.mxu0 %v314
    %336 = vmatpush.bf16.msra.mxu0 %v313
    %337 = vmatmul.bf16.gmra.mxu0 %v265
    %v338 = vpop.f32.mrf.mxu0
    %v339 = vadd.f32 0.0, %v338
    %v340 = vpop.f32.mrf.mxu0
    %v341 = vadd.f32 0.0, %v340
    %342 = vmatmul.bf16.gmra.mxu0 %v266
    %v343 = vpop.f32.mrf.mxu0
    %v344 = vadd.f32 0.0, %v343
    %v345 = vpop.f32.mrf.mxu0
    %v346 = vadd.f32 0.0, %v345
    %347 = vmatmul.bf16.gmra.mxu0 %v267
    %v348 = vpop.f32.mrf.mxu0
    %v349 = vadd.f32 0.0, %v348
    %v350 = vpop.f32.mrf.mxu0
    %v351 = vadd.f32 0.0, %v350
    %352 = vmatmul.bf16.gmra.mxu0 %v268
    %v353 = vpop.f32.mrf.mxu0
    %v354 = vadd.f32 0.0, %v353
    %v355 = vpop.f32.mrf.mxu0
    %v356 = vadd.f32 0.0, %v355
    %357 = vmatmul.bf16.gmra.mxu0 %v269
    %v358 = vpop.f32.mrf.mxu0
    %v359 = vadd.f32 0.0, %v358
    %v360 = vpop.f32.mrf.mxu0
    %v361 = vadd.f32 0.0, %v360
    %362 = vmatmul.bf16.gmra.mxu0 %v270
    %v363 = vpop.f32.mrf.mxu0
    %v364 = vadd.f32 0.0, %v363
    %v365 = vpop.f32.mrf.mxu0
    %v366 = vadd.f32 0.0, %v365
    %367 = vmatmul.bf16.gmra.mxu0 %v271
    %v368 = vpop.f32.mrf.mxu0
    %v369 = vadd.f32 0.0, %v368
    %v370 = vpop.f32.mrf.mxu0
    %v371 = vadd.f32 0.0, %v370
    %372 = vmatmul.bf16.gmra.mxu0 %v272
    %v373 = vpop.f32.mrf.mxu0
    %v374 = vadd.f32 0.0, %v373
    %v375 = vpop.f32.mrf.mxu0
    %v376 = vadd.f32 0.0, %v375
    %377 = vdwg.mxu0
    %v378 = vld [vmem:[#allocation2] sm:$0xf]
    %v379 = vld [vmem:[#allocation2 + $0x4] sm:$0xf]
    %v380 = vld [vmem:[#allocation2 + $0x8] sm:$0xf]
    %v381 = vld [vmem:[#allocation2 + $0xc] sm:$0xf]
    %v382 = vld [vmem:[#allocation2 + $0x10] sm:$0xf]
    %v383 = vld [vmem:[#allocation2 + $0x14] sm:$0xf]
    %v384 = vld [vmem:[#allocation2 + $0x18] sm:$0xf]
    %v385 = vld [vmem:[#allocation2 + $0x1c] sm:$0xf]
    %v386 = vld [vmem:[#allocation2 + $0x20] sm:$0xf]
    %v387 = vld [vmem:[#allocation2 + $0x24] sm:$0xf]
    %v388 = vld [vmem:[#allocation2 + $0x28] sm:$0xf]
    %v389 = vld [vmem:[#allocation2 + $0x2c] sm:$0xf]
    %v390 = vld [vmem:[#allocation2 + $0x30] sm:$0xf]
    %v391 = vld [vmem:[#allocation2 + $0x34] sm:$0xf]
    %v392 = vld [vmem:[#allocation2 + $0x38] sm:$0xf]
    %v393 = vld [vmem:[#allocation2 + $0x3c] sm:$0xf]
    %v394 = vpack.c.bf16 %v341, %v339
    %v395 = vpack.c.bf16 %v346, %v344
    %v396 = vpack.c.bf16 %v351, %v349
    %v397 = vpack.c.bf16 %v356, %v354
    %v398 = vpack.c.bf16 %v361, %v359
    %v399 = vpack.c.bf16 %v366, %v364
    %v400 = vpack.c.bf16 %v371, %v369
    %v401 = vpack.c.bf16 %v376, %v374
    %v418 = vunpack.c.l.b16 %v378
    %v419 = vunpack.c.l.b16 %v379
    %v420 = vunpack.c.l.b16 %v380
    %v421 = vunpack.c.l.b16 %v381
    %v422 = vunpack.c.l.b16 %v382
    %v423 = vunpack.c.l.b16 %v383
    %v424 = vunpack.c.l.b16 %v384
    %v425 = vunpack.c.l.b16 %v385
    %v426 = vunpack.c.l.b16 %v386
    %v427 = vunpack.c.l.b16 %v387
    %v428 = vunpack.c.l.b16 %v388
    %v429 = vunpack.c.l.b16 %v389
    %v430 = vunpack.c.l.b16 %v390
    %v431 = vunpack.c.l.b16 %v391
    %v432 = vunpack.c.l.b16 %v392
    %v433 = vunpack.c.l.b16 %v393
    %v434 = vpack.c.b16 %v419, %v418
    %v435 = vpack.c.b16 %v421, %v420
    %v436 = vpack.c.b16 %v423, %v422
    %v437 = vpack.c.b16 %v425, %v424
    %v438 = vpack.c.b16 %v427, %v426
    %v439 = vpack.c.b16 %v429, %v428
    %v440 = vpack.c.b16 %v431, %v430
    %v441 = vpack.c.b16 %v433, %v432
    %450 = vmatpush.bf16.msra.mxu0 %v401
    %451 = vmatpush.bf16.msra.mxu0 %v400
    %452 = vmatpush.bf16.msra.mxu0 %v399
    %453 = vmatpush.bf16.msra.mxu0 %v398
    %454 = vmatpush.bf16.msra.mxu0 %v397
    %455 = vmatpush.bf16.msra.mxu0 %v396
    %456 = vmatpush.bf16.msra.mxu0 %v395
    %457 = vmatpush.bf16.msra.mxu0 %v394
    %458 = vmatmul.bf16.gmra.mxu0 %v434
    %v459 = vpop.f32.mrf.mxu0
    %v460 = vadd.f32 0.0, %v459
    %v461 = vpop.f32.mrf.mxu0
    %v462 = vadd.f32 0.0, %v461
    %463 = vmatmul.bf16.gmra.mxu0 %v435
    %v464 = vpop.f32.mrf.mxu0
    %v465 = vadd.f32 0.0, %v464
    %v466 = vpop.f32.mrf.mxu0
    %v467 = vadd.f32 0.0, %v466
    %468 = vmatmul.bf16.gmra.mxu0 %v436
    %v469 = vpop.f32.mrf.mxu0
    %v470 = vadd.f32 0.0, %v469
    %v471 = vpop.f32.mrf.mxu0
    %v472 = vadd.f32 0.0, %v471
    %473 = vmatmul.bf16.gmra.mxu0 %v437
    %v474 = vpop.f32.mrf.mxu0
    %v475 = vadd.f32 0.0, %v474
    %v476 = vpop.f32.mrf.mxu0
    %v477 = vadd.f32 0.0, %v476
    %478 = vmatmul.bf16.gmra.mxu0 %v438
    %v479 = vpop.f32.mrf.mxu0
    %v480 = vadd.f32 0.0, %v479
    %v481 = vpop.f32.mrf.mxu0
    %v482 = vadd.f32 0.0, %v481
    %483 = vmatmul.bf16.gmra.mxu0 %v439
    %v484 = vpop.f32.mrf.mxu0
    %v485 = vadd.f32 0.0, %v484
    %v486 = vpop.f32.mrf.mxu0
    %v487 = vadd.f32 0.0, %v486
    %488 = vmatmul.bf16.gmra.mxu0 %v440
    %v489 = vpop.f32.mrf.mxu0
    %v490 = vadd.f32 0.0, %v489
    %v491 = vpop.f32.mrf.mxu0
    %v492 = vadd.f32 0.0, %v491
    %493 = vmatmul.bf16.gmra.mxu0 %v441
    %v494 = vpop.f32.mrf.mxu0
    %v495 = vadd.f32 0.0, %v494
    %v496 = vpop.f32.mrf.mxu0
    %v497 = vadd.f32 0.0, %v496
    %498 = vdwg.mxu0
    %v499 = vld [vmem:[%s4] sm:$0x1]
    %v501 = vperm.slane %v499, 0
    %v503 = vmul.f32 %v460, %v501
    %v504 = vmul.f32 %v462, %v501
    %v505 = vmul.f32 %v465, %v501
    %v506 = vmul.f32 %v467, %v501
    %v507 = vmul.f32 %v470, %v501
    %v508 = vmul.f32 %v472, %v501
    %v509 = vmul.f32 %v475, %v501
    %v510 = vmul.f32 %v477, %v501
    %v511 = vmul.f32 %v480, %v501
    %v512 = vmul.f32 %v482, %v501
    %v513 = vmul.f32 %v485, %v501
    %v514 = vmul.f32 %v487, %v501
    %v515 = vmul.f32 %v490, %v501
    %v516 = vmul.f32 %v492, %v501
    %v517 = vmul.f32 %v495, %v501
    %v518 = vmul.f32 %v497, %v501
    %v519 = vld [vmem:[%s5] sm:$0x1]
    %v521 = vperm.slane %v519, 0
    %v523 = vadd.f32 %v503, %v521
    %v524 = vadd.f32 %v504, %v521
    %v525 = vadd.f32 %v505, %v521
    %v526 = vadd.f32 %v506, %v521
    %v527 = vadd.f32 %v507, %v521
    %v528 = vadd.f32 %v508, %v521
    %v529 = vadd.f32 %v509, %v521
    %v530 = vadd.f32 %v510, %v521
    %v531 = vadd.f32 %v511, %v521
    %v532 = vadd.f32 %v512, %v521
    %v533 = vadd.f32 %v513, %v521
    %v534 = vadd.f32 %v514, %v521
    %v535 = vadd.f32 %v515, %v521
    %v536 = vadd.f32 %v516, %v521
    %v537 = vadd.f32 %v517, %v521
    %v538 = vadd.f32 %v518, %v521
    %v539 = vmax.f32 %v523, 0.0
    %v540 = vmax.f32 %v524, 0.0
    %v541 = vmax.f32 %v525, 0.0
    %v542 = vmax.f32 %v526, 0.0
    %v543 = vmax.f32 %v527, 0.0
    %v544 = vmax.f32 %v528, 0.0
    %v545 = vmax.f32 %v529, 0.0
    %v546 = vmax.f32 %v530, 0.0
    %v547 = vmax.f32 %v531, 0.0
    %v548 = vmax.f32 %v532, 0.0
    %v549 = vmax.f32 %v533, 0.0
    %v550 = vmax.f32 %v534, 0.0
    %v551 = vmax.f32 %v535, 0.0
    %v552 = vmax.f32 %v536, 0.0
    %v553 = vmax.f32 %v537, 0.0
    %v554 = vmax.f32 %v538, 0.0
    %v555 = vpack.c.bf16 %v540, %v539
    %v556 = vpack.c.bf16 %v542, %v541
    %v557 = vpack.c.bf16 %v544, %v543
    %v558 = vpack.c.bf16 %v546, %v545
    %v559 = vpack.c.bf16 %v548, %v547
    %v560 = vpack.c.bf16 %v550, %v549
    %v561 = vpack.c.bf16 %v552, %v551
    %v562 = vpack.c.bf16 %v554, %v553
    %v563 = vld [vmem:[#allocation10] sm:$0xf]
    %v564 = vld [vmem:[#allocation10 + $0x4] sm:$0xf]
    %v565 = vld [vmem:[#allocation10 + $0x8] sm:$0xf]
    %v566 = vld [vmem:[#allocation10 + $0xc] sm:$0xf]
    %v567 = vld [vmem:[#allocation10 + $0x10] sm:$0xf]
    %v568 = vld [vmem:[#allocation10 + $0x14] sm:$0xf]
    %v569 = vld [vmem:[#allocation10 + $0x18] sm:$0xf]
    %v570 = vld [vmem:[#allocation10 + $0x1c] sm:$0xf]
    %v571 = vld [vmem:[#allocation10 + $0x20] sm:$0xf]
    %v572 = vld [vmem:[#allocation10 + $0x24] sm:$0xf]
    %v573 = vld [vmem:[#allocation10 + $0x28] sm:$0xf]
    %v574 = vld [vmem:[#allocation10 + $0x2c] sm:$0xf]
    %v575 = vld [vmem:[#allocation10 + $0x30] sm:$0xf]
    %v576 = vld [vmem:[#allocation10 + $0x34] sm:$0xf]
    %v577 = vld [vmem:[#allocation10 + $0x38] sm:$0xf]
    %v578 = vld [vmem:[#allocation10 + $0x3c] sm:$0xf]
    %v595 = vunpack.c.l.b16 %v563
    %v596 = vunpack.c.l.b16 %v564
    %v597 = vunpack.c.l.b16 %v565
    %v598 = vunpack.c.l.b16 %v566
    %v599 = vunpack.c.l.b16 %v567
    %v600 = vunpack.c.l.b16 %v568
    %v601 = vunpack.c.l.b16 %v569
    %v602 = vunpack.c.l.b16 %v570
    %v603 = vunpack.c.l.b16 %v571
    %v604 = vunpack.c.l.b16 %v572
    %v605 = vunpack.c.l.b16 %v573
    %v606 = vunpack.c.l.b16 %v574
    %v607 = vunpack.c.l.b16 %v575
    %v608 = vunpack.c.l.b16 %v576
    %v609 = vunpack.c.l.b16 %v577
    %v610 = vunpack.c.l.b16 %v578
    %v611 = vpack.c.b16 %v596, %v595
    %v612 = vpack.c.b16 %v598, %v597
    %v613 = vpack.c.b16 %v600, %v599
    %v614 = vpack.c.b16 %v602, %v601
    %v615 = vpack.c.b16 %v604, %v603
    %v616 = vpack.c.b16 %v606, %v605
    %v617 = vpack.c.b16 %v608, %v607
    %v618 = vpack.c.b16 %v610, %v609
    %627 = vmatpush.bf16.msra.mxu0 %v618
    %628 = vmatpush.bf16.msra.mxu0 %v617
    %629 = vmatpush.bf16.msra.mxu0 %v616
    %630 = vmatpush.bf16.msra.mxu0 %v615
    %631 = vmatpush.bf16.msra.mxu0 %v614
    %632 = vmatpush.bf16.msra.mxu0 %v613
    %633 = vmatpush.bf16.msra.mxu0 %v612
    %634 = vmatpush.bf16.msra.mxu0 %v611
    %635 = vmatmul.bf16.gmra.mxu0 %v555
    %v636 = vpop.f32.mrf.mxu0
    %v637 = vadd.f32 0.0, %v636
    %v638 = vpop.f32.mrf.mxu0
    %v639 = vadd.f32 0.0, %v638
    %640 = vmatmul.bf16.gmra.mxu0 %v556
    %v641 = vpop.f32.mrf.mxu0
    %v642 = vadd.f32 0.0, %v641
    %v643 = vpop.f32.mrf.mxu0
    %v644 = vadd.f32 0.0, %v643
    %645 = vmatmul.bf16.gmra.mxu0 %v557
    %v646 = vpop.f32.mrf.mxu0
    %v647 = vadd.f32 0.0, %v646
    %v648 = vpop.f32.mrf.mxu0
    %v649 = vadd.f32 0.0, %v648
    %650 = vmatmul.bf16.gmra.mxu0 %v558
    %v651 = vpop.f32.mrf.mxu0
    %v652 = vadd.f32 0.0, %v651
    %v653 = vpop.f32.mrf.mxu0
    %v654 = vadd.f32 0.0, %v653
    %655 = vmatmul.bf16.gmra.mxu0 %v559
    %v656 = vpop.f32.mrf.mxu0
    %v657 = vadd.f32 0.0, %v656
    %v658 = vpop.f32.mrf.mxu0
    %v659 = vadd.f32 0.0, %v658
    %660 = vmatmul.bf16.gmra.mxu0 %v560
    %v661 = vpop.f32.mrf.mxu0
    %v662 = vadd.f32 0.0, %v661
    %v663 = vpop.f32.mrf.mxu0
    %v664 = vadd.f32 0.0, %v663
    %665 = vmatmul.bf16.gmra.mxu0 %v561
    %v666 = vpop.f32.mrf.mxu0
    %v667 = vadd.f32 0.0, %v666
    %v668 = vpop.f32.mrf.mxu0
    %v669 = vadd.f32 0.0, %v668
    %670 = vmatmul.bf16.gmra.mxu0 %v562
    %v671 = vpop.f32.mrf.mxu0
    %v672 = vadd.f32 0.0, %v671
    %v673 = vpop.f32.mrf.mxu0
    %v674 = vadd.f32 0.0, %v673
    %675 = vdwg.mxu0
    %v676 = vpack.c.bf16 %v639, %v637
    %v677 = vpack.c.bf16 %v644, %v642
    %v678 = vpack.c.bf16 %v649, %v647
    %v679 = vpack.c.bf16 %v654, %v652
    %v680 = vpack.c.bf16 %v659, %v657
    %v681 = vpack.c.bf16 %v664, %v662
    %v682 = vpack.c.bf16 %v669, %v667
    %v683 = vpack.c.bf16 %v674, %v672
    %684 = vmatpush.bf16.msra.mxu0 %v683
    %685 = vmatpush.bf16.msra.mxu0 %v682
    %686 = vmatpush.bf16.msra.mxu0 %v681
    %687 = vmatpush.bf16.msra.mxu0 %v680
    %688 = vmatpush.bf16.msra.mxu0 %v679
    %689 = vmatpush.bf16.msra.mxu0 %v678
    %690 = vmatpush.bf16.msra.mxu0 %v677
    %691 = vmatpush.bf16.msra.mxu0 %v676
    %692 = vmatmul.bf16.gmra.mxu0 %v434
    %v693 = vpop.f32.mrf.mxu0
    %v694 = vadd.f32 0.0, %v693
    %v695 = vpop.f32.mrf.mxu0
    %v696 = vadd.f32 0.0, %v695
    %697 = vmatmul.bf16.gmra.mxu0 %v435
    %v698 = vpop.f32.mrf.mxu0
    %v699 = vadd.f32 0.0, %v698
    %v700 = vpop.f32.mrf.mxu0
    %v701 = vadd.f32 0.0, %v700
    %702 = vmatmul.bf16.gmra.mxu0 %v436
    %v703 = vpop.f32.mrf.mxu0
    %v704 = vadd.f32 0.0, %v703
    %v705 = vpop.f32.mrf.mxu0
    %v706 = vadd.f32 0.0, %v705
    %707 = vmatmul.bf16.gmra.mxu0 %v437
    %v708 = vpop.f32.mrf.mxu0
    %v709 = vadd.f32 0.0, %v708
    %v710 = vpop.f32.mrf.mxu0
    %v711 = vadd.f32 0.0, %v710
    %712 = vmatmul.bf16.gmra.mxu0 %v438
    %v713 = vpop.f32.mrf.mxu0
    %v714 = vadd.f32 0.0, %v713
    %v715 = vpop.f32.mrf.mxu0
    %v716 = vadd.f32 0.0, %v715
    %717 = vmatmul.bf16.gmra.mxu0 %v439
    %v718 = vpop.f32.mrf.mxu0
    %v719 = vadd.f32 0.0, %v718
    %v720 = vpop.f32.mrf.mxu0
    %v721 = vadd.f32 0.0, %v720
    %722 = vmatmul.bf16.gmra.mxu0 %v440
    %v723 = vpop.f32.mrf.mxu0
    %v724 = vadd.f32 0.0, %v723
    %v725 = vpop.f32.mrf.mxu0
    %v726 = vadd.f32 0.0, %v725
    %727 = vmatmul.bf16.gmra.mxu0 %v441
    %v728 = vpop.f32.mrf.mxu0
    %v729 = vadd.f32 0.0, %v728
    %v730 = vpop.f32.mrf.mxu0
    %v731 = vadd.f32 0.0, %v730
    %732 = vdwg.mxu0
    %v733 = vld [vmem:[%s7] sm:$0x1]
    %v735 = vperm.slane %v733, 0
    %v737 = vmul.f32 %v694, %v735
    %v738 = vmul.f32 %v696, %v735
    %v739 = vmul.f32 %v699, %v735
    %v740 = vmul.f32 %v701, %v735
    %v741 = vmul.f32 %v704, %v735
    %v742 = vmul.f32 %v706, %v735
    %v743 = vmul.f32 %v709, %v735
    %v744 = vmul.f32 %v711, %v735
    %v745 = vmul.f32 %v714, %v735
    %v746 = vmul.f32 %v716, %v735
    %v747 = vmul.f32 %v719, %v735
    %v748 = vmul.f32 %v721, %v735
    %v749 = vmul.f32 %v724, %v735
    %v750 = vmul.f32 %v726, %v735
    %v751 = vmul.f32 %v729, %v735
    %v752 = vmul.f32 %v731, %v735
    %v753 = vld [vmem:[%s8] sm:$0x1]
    %v755 = vperm.slane %v753, 0
    %v757 = vadd.f32 %v737, %v755
    %v758 = vadd.f32 %v738, %v755
    %v759 = vadd.f32 %v739, %v755
    %v760 = vadd.f32 %v740, %v755
    %v761 = vadd.f32 %v741, %v755
    %v762 = vadd.f32 %v742, %v755
    %v763 = vadd.f32 %v743, %v755
    %v764 = vadd.f32 %v744, %v755
    %v765 = vadd.f32 %v745, %v755
    %v766 = vadd.f32 %v746, %v755
    %v767 = vadd.f32 %v747, %v755
    %v768 = vadd.f32 %v748, %v755
    %v769 = vadd.f32 %v749, %v755
    %v770 = vadd.f32 %v750, %v755
    %v771 = vadd.f32 %v751, %v755
    %v772 = vadd.f32 %v752, %v755
    %v773 = vmax.f32 %v757, 0.0
    %v774 = vmax.f32 %v758, 0.0
    %v775 = vmax.f32 %v759, 0.0
    %v776 = vmax.f32 %v760, 0.0
    %v777 = vmax.f32 %v761, 0.0
    %v778 = vmax.f32 %v762, 0.0
    %v779 = vmax.f32 %v763, 0.0
    %v780 = vmax.f32 %v764, 0.0
    %v781 = vmax.f32 %v765, 0.0
    %v782 = vmax.f32 %v766, 0.0
    %v783 = vmax.f32 %v767, 0.0
    %v784 = vmax.f32 %v768, 0.0
    %v785 = vmax.f32 %v769, 0.0
    %v786 = vmax.f32 %v770, 0.0
    %v787 = vmax.f32 %v771, 0.0
    %v788 = vmax.f32 %v772, 0.0
    %v789 = vpack.c.bf16 %v774, %v773
    %v790 = vpack.c.bf16 %v776, %v775
    %v791 = vpack.c.bf16 %v778, %v777
    %v792 = vpack.c.bf16 %v780, %v779
    %v793 = vpack.c.bf16 %v782, %v781
    %v794 = vpack.c.bf16 %v784, %v783
    %v795 = vpack.c.bf16 %v786, %v785
    %v796 = vpack.c.bf16 %v788, %v787
    %v797 = vld [vmem:[#allocation11] sm:$0xf]
    %v798 = vld [vmem:[#allocation11 + $0x4] sm:$0xf]
    %v799 = vld [vmem:[#allocation11 + $0x8] sm:$0xf]
    %v800 = vld [vmem:[#allocation11 + $0xc] sm:$0xf]
    %v801 = vld [vmem:[#allocation11 + $0x10] sm:$0xf]
    %v802 = vld [vmem:[#allocation11 + $0x14] sm:$0xf]
    %v803 = vld [vmem:[#allocation11 + $0x18] sm:$0xf]
    %v804 = vld [vmem:[#allocation11 + $0x1c] sm:$0xf]
    %v805 = vld [vmem:[#allocation11 + $0x20] sm:$0xf]
    %v806 = vld [vmem:[#allocation11 + $0x24] sm:$0xf]
    %v807 = vld [vmem:[#allocation11 + $0x28] sm:$0xf]
    %v808 = vld [vmem:[#allocation11 + $0x2c] sm:$0xf]
    %v809 = vld [vmem:[#allocation11 + $0x30] sm:$0xf]
    %v810 = vld [vmem:[#allocation11 + $0x34] sm:$0xf]
    %v811 = vld [vmem:[#allocation11 + $0x38] sm:$0xf]
    %v812 = vld [vmem:[#allocation11 + $0x3c] sm:$0xf]
    %v829 = vunpack.c.l.b16 %v797
    %v830 = vunpack.c.l.b16 %v798
    %v831 = vunpack.c.l.b16 %v799
    %v832 = vunpack.c.l.b16 %v800
    %v833 = vunpack.c.l.b16 %v801
    %v834 = vunpack.c.l.b16 %v802
    %v835 = vunpack.c.l.b16 %v803
    %v836 = vunpack.c.l.b16 %v804
    %v837 = vunpack.c.l.b16 %v805
    %v838 = vunpack.c.l.b16 %v806
    %v839 = vunpack.c.l.b16 %v807
    %v840 = vunpack.c.l.b16 %v808
    %v841 = vunpack.c.l.b16 %v809
    %v842 = vunpack.c.l.b16 %v810
    %v843 = vunpack.c.l.b16 %v811
    %v844 = vunpack.c.l.b16 %v812
    %v845 = vpack.c.b16 %v830, %v829
    %v846 = vpack.c.b16 %v832, %v831
    %v847 = vpack.c.b16 %v834, %v833
    %v848 = vpack.c.b16 %v836, %v835
    %v849 = vpack.c.b16 %v838, %v837
    %v850 = vpack.c.b16 %v840, %v839
    %v851 = vpack.c.b16 %v842, %v841
    %v852 = vpack.c.b16 %v844, %v843
    %861 = vmatpush.bf16.msra.mxu0 %v852
    %862 = vmatpush.bf16.msra.mxu0 %v851
    %863 = vmatpush.bf16.msra.mxu0 %v850
    %864 = vmatpush.bf16.msra.mxu0 %v849
    %865 = vmatpush.bf16.msra.mxu0 %v848
    %866 = vmatpush.bf16.msra.mxu0 %v847
    %867 = vmatpush.bf16.msra.mxu0 %v846
    %868 = vmatpush.bf16.msra.mxu0 %v845
    %869 = vmatmul.bf16.gmra.mxu0 %v789
    %v870 = vpop.f32.mrf.mxu0
    %v871 = vadd.f32 0.0, %v870
    %v872 = vpop.f32.mrf.mxu0
    %v873 = vadd.f32 0.0, %v872
    %874 = vmatmul.bf16.gmra.mxu0 %v790
    %v875 = vpop.f32.mrf.mxu0
    %v876 = vadd.f32 0.0, %v875
    %v877 = vpop.f32.mrf.mxu0
    %v878 = vadd.f32 0.0, %v877
    %879 = vmatmul.bf16.gmra.mxu0 %v791
    %v880 = vpop.f32.mrf.mxu0
    %v881 = vadd.f32 0.0, %v880
    %v882 = vpop.f32.mrf.mxu0
    %v883 = vadd.f32 0.0, %v882
    %884 = vmatmul.bf16.gmra.mxu0 %v792
    %v885 = vpop.f32.mrf.mxu0
    %v886 = vadd.f32 0.0, %v885
    %v887 = vpop.f32.mrf.mxu0
    %v888 = vadd.f32 0.0, %v887
    %889 = vmatmul.bf16.gmra.mxu0 %v793
    %v890 = vpop.f32.mrf.mxu0
    %v891 = vadd.f32 0.0, %v890
    %v892 = vpop.f32.mrf.mxu0
    %v893 = vadd.f32 0.0, %v892
    %894 = vmatmul.bf16.gmra.mxu0 %v794
    %v895 = vpop.f32.mrf.mxu0
    %v896 = vadd.f32 0.0, %v895
    %v897 = vpop.f32.mrf.mxu0
    %v898 = vadd.f32 0.0, %v897
    %899 = vmatmul.bf16.gmra.mxu0 %v795
    %v900 = vpop.f32.mrf.mxu0
    %v901 = vadd.f32 0.0, %v900
    %v902 = vpop.f32.mrf.mxu0
    %v903 = vadd.f32 0.0, %v902
    %904 = vmatmul.bf16.gmra.mxu0 %v796
    %v905 = vpop.f32.mrf.mxu0
    %v906 = vadd.f32 0.0, %v905
    %v907 = vpop.f32.mrf.mxu0
    %v908 = vadd.f32 0.0, %v907
    %909 = vdwg.mxu0
    %v910 = vpack.c.bf16 %v873, %v871
    %v911 = vpack.c.bf16 %v878, %v876
    %v912 = vpack.c.bf16 %v883, %v881
    %v913 = vpack.c.bf16 %v888, %v886
    %v914 = vpack.c.bf16 %v893, %v891
    %v915 = vpack.c.bf16 %v898, %v896
    %v916 = vpack.c.bf16 %v903, %v901
    %v917 = vpack.c.bf16 %v908, %v906
    %918 = vmatpush.bf16.msra.mxu0 %v917
    %919 = vmatpush.bf16.msra.mxu0 %v916
    %920 = vmatpush.bf16.msra.mxu0 %v915
    %921 = vmatpush.bf16.msra.mxu0 %v914
    %922 = vmatpush.bf16.msra.mxu0 %v913
    %923 = vmatpush.bf16.msra.mxu0 %v912
    %924 = vmatpush.bf16.msra.mxu0 %v911
    %925 = vmatpush.bf16.msra.mxu0 %v910
    %926 = vmatmul.bf16.gmra.mxu0 %v434
    %v927 = vpop.f32.mrf.mxu0
    %v928 = vadd.f32 0.0, %v927
    %v929 = vpop.f32.mrf.mxu0
    %v930 = vadd.f32 0.0, %v929
    %931 = vmatmul.bf16.gmra.mxu0 %v435
    %v932 = vpop.f32.mrf.mxu0
    %v933 = vadd.f32 0.0, %v932
    %v934 = vpop.f32.mrf.mxu0
    %v935 = vadd.f32 0.0, %v934
    %936 = vmatmul.bf16.gmra.mxu0 %v436
    %v937 = vpop.f32.mrf.mxu0
    %v938 = vadd.f32 0.0, %v937
    %v939 = vpop.f32.mrf.mxu0
    %v940 = vadd.f32 0.0, %v939
    %941 = vmatmul.bf16.gmra.mxu0 %v437
    %v942 = vpop.f32.mrf.mxu0
    %v943 = vadd.f32 0.0, %v942
    %v944 = vpop.f32.mrf.mxu0
    %v945 = vadd.f32 0.0, %v944
    %946 = vmatmul.bf16.gmra.mxu0 %v438
    %v947 = vpop.f32.mrf.mxu0
    %v948 = vadd.f32 0.0, %v947
    %v949 = vpop.f32.mrf.mxu0
    %v950 = vadd.f32 0.0, %v949
    %951 = vmatmul.bf16.gmra.mxu0 %v439
    %v952 = vpop.f32.mrf.mxu0
    %v953 = vadd.f32 0.0, %v952
    %v954 = vpop.f32.mrf.mxu0
    %v955 = vadd.f32 0.0, %v954
    %956 = vmatmul.bf16.gmra.mxu0 %v440
    %v957 = vpop.f32.mrf.mxu0
    %v958 = vadd.f32 0.0, %v957
    %v959 = vpop.f32.mrf.mxu0
    %v960 = vadd.f32 0.0, %v959
    %961 = vmatmul.bf16.gmra.mxu0 %v441
    %v962 = vpop.f32.mrf.mxu0
    %v963 = vadd.f32 0.0, %v962
    %v964 = vpop.f32.mrf.mxu0
    %v965 = vadd.f32 0.0, %v964
    %966 = vdwg.mxu0
    %v967 = vld [vmem:[%s10] sm:$0x1]
    %v969 = vperm.slane %v967, 0
    %v971 = vmul.f32 %v928, %v969
    %v972 = vmul.f32 %v930, %v969
    %v973 = vmul.f32 %v933, %v969
    %v974 = vmul.f32 %v935, %v969
    %v975 = vmul.f32 %v938, %v969
    %v976 = vmul.f32 %v940, %v969
    %v977 = vmul.f32 %v943, %v969
    %v978 = vmul.f32 %v945, %v969
    %v979 = vmul.f32 %v948, %v969
    %v980 = vmul.f32 %v950, %v969
    %v981 = vmul.f32 %v953, %v969
    %v982 = vmul.f32 %v955, %v969
    %v983 = vmul.f32 %v958, %v969
    %v984 = vmul.f32 %v960, %v969
    %v985 = vmul.f32 %v963, %v969
    %v986 = vmul.f32 %v965, %v969
    %v987 = vld [vmem:[%s11] sm:$0x1]
    %v989 = vperm.slane %v987, 0
    %v991 = vadd.f32 %v971, %v989
    %v992 = vadd.f32 %v972, %v989
    %v993 = vadd.f32 %v973, %v989
    %v994 = vadd.f32 %v974, %v989
    %v995 = vadd.f32 %v975, %v989
    %v996 = vadd.f32 %v976, %v989
    %v997 = vadd.f32 %v977, %v989
    %v998 = vadd.f32 %v978, %v989
    %v999 = vadd.f32 %v979, %v989
    %v1000 = vadd.f32 %v980, %v989
    %v1001 = vadd.f32 %v981, %v989
    %v1002 = vadd.f32 %v982, %v989
    %v1003 = vadd.f32 %v983, %v989
    %v1004 = vadd.f32 %v984, %v989
    %v1005 = vadd.f32 %v985, %v989
    %v1006 = vadd.f32 %v986, %v989
    %v1007 = vmax.f32 %v991, 0.0
    %v1008 = vmax.f32 %v992, 0.0
    %v1009 = vmax.f32 %v993, 0.0
    %v1010 = vmax.f32 %v994, 0.0
    %v1011 = vmax.f32 %v995, 0.0
    %v1012 = vmax.f32 %v996, 0.0
    %v1013 = vmax.f32 %v997, 0.0
    %v1014 = vmax.f32 %v998, 0.0
    %v1015 = vmax.f32 %v999, 0.0
    %v1016 = vmax.f32 %v1000, 0.0
    %v1017 = vmax.f32 %v1001, 0.0
    %v1018 = vmax.f32 %v1002, 0.0
    %v1019 = vmax.f32 %v1003, 0.0
    %v1020 = vmax.f32 %v1004, 0.0
    %v1021 = vmax.f32 %v1005, 0.0
    %v1022 = vmax.f32 %v1006, 0.0
    %v1023 = vpack.c.bf16 %v1008, %v1007
    %v1024 = vpack.c.bf16 %v1010, %v1009
    %v1025 = vpack.c.bf16 %v1012, %v1011
    %v1026 = vpack.c.bf16 %v1014, %v1013
    %v1027 = vpack.c.bf16 %v1016, %v1015
    %v1028 = vpack.c.bf16 %v1018, %v1017
    %v1029 = vpack.c.bf16 %v1020, %v1019
    %v1030 = vpack.c.bf16 %v1022, %v1021
    %v1031 = vld [vmem:[#allocation13] sm:$0xf]
    %v1032 = vld [vmem:[#allocation13 + $0x4] sm:$0xf]
    %v1033 = vld [vmem:[#allocation13 + $0x8] sm:$0xf]
    %v1034 = vld [vmem:[#allocation13 + $0xc] sm:$0xf]
    %v1035 = vld [vmem:[#allocation13 + $0x10] sm:$0xf]
    %v1036 = vld [vmem:[#allocation13 + $0x14] sm:$0xf]
    %v1037 = vld [vmem:[#allocation13 + $0x18] sm:$0xf]
    %v1038 = vld [vmem:[#allocation13 + $0x1c] sm:$0xf]
    %v1039 = vld [vmem:[#allocation13 + $0x20] sm:$0xf]
    %v1040 = vld [vmem:[#allocation13 + $0x24] sm:$0xf]
    %v1041 = vld [vmem:[#allocation13 + $0x28] sm:$0xf]
    %v1042 = vld [vmem:[#allocation13 + $0x2c] sm:$0xf]
    %v1043 = vld [vmem:[#allocation13 + $0x30] sm:$0xf]
    %v1044 = vld [vmem:[#allocation13 + $0x34] sm:$0xf]
    %v1045 = vld [vmem:[#allocation13 + $0x38] sm:$0xf]
    %v1046 = vld [vmem:[#allocation13 + $0x3c] sm:$0xf]
    %v1063 = vunpack.c.l.b16 %v1031
    %v1064 = vunpack.c.l.b16 %v1032
    %v1065 = vunpack.c.l.b16 %v1033
    %v1066 = vunpack.c.l.b16 %v1034
    %v1067 = vunpack.c.l.b16 %v1035
    %v1068 = vunpack.c.l.b16 %v1036
    %v1069 = vunpack.c.l.b16 %v1037
    %v1070 = vunpack.c.l.b16 %v1038
    %v1071 = vunpack.c.l.b16 %v1039
    %v1072 = vunpack.c.l.b16 %v1040
    %v1073 = vunpack.c.l.b16 %v1041
    %v1074 = vunpack.c.l.b16 %v1042
    %v1075 = vunpack.c.l.b16 %v1043
    %v1076 = vunpack.c.l.b16 %v1044
    %v1077 = vunpack.c.l.b16 %v1045
    %v1078 = vunpack.c.l.b16 %v1046
    %v1079 = vpack.c.b16 %v1064, %v1063
    %v1080 = vpack.c.b16 %v1066, %v1065
    %v1081 = vpack.c.b16 %v1068, %v1067
    %v1082 = vpack.c.b16 %v1070, %v1069
    %v1083 = vpack.c.b16 %v1072, %v1071
    %v1084 = vpack.c.b16 %v1074, %v1073
    %v1085 = vpack.c.b16 %v1076, %v1075
    %v1086 = vpack.c.b16 %v1078, %v1077
    %1095 = vmatpush.bf16.msra.mxu0 %v1086
    %1096 = vmatpush.bf16.msra.mxu0 %v1085
    %1097 = vmatpush.bf16.msra.mxu0 %v1084
    %1098 = vmatpush.bf16.msra.mxu0 %v1083
    %1099 = vmatpush.bf16.msra.mxu0 %v1082
    %1100 = vmatpush.bf16.msra.mxu0 %v1081
    %1101 = vmatpush.bf16.msra.mxu0 %v1080
    %1102 = vmatpush.bf16.msra.mxu0 %v1079
    %1103 = vmatmul.bf16.gmra.mxu0 %v1023
    %v1104 = vpop.f32.mrf.mxu0
    %v1105 = vadd.f32 0.0, %v1104
    %v1106 = vpop.f32.mrf.mxu0
    %v1107 = vadd.f32 0.0, %v1106
    %1108 = vmatmul.bf16.gmra.mxu0 %v1024
    %v1109 = vpop.f32.mrf.mxu0
    %v1110 = vadd.f32 0.0, %v1109
    %v1111 = vpop.f32.mrf.mxu0
    %v1112 = vadd.f32 0.0, %v1111
    %1113 = vmatmul.bf16.gmra.mxu0 %v1025
    %v1114 = vpop.f32.mrf.mxu0
    %v1115 = vadd.f32 0.0, %v1114
    %v1116 = vpop.f32.mrf.mxu0
    %v1117 = vadd.f32 0.0, %v1116
    %1118 = vmatmul.bf16.gmra.mxu0 %v1026
    %v1119 = vpop.f32.mrf.mxu0
    %v1120 = vadd.f32 0.0, %v1119
    %v1121 = vpop.f32.mrf.mxu0
    %v1122 = vadd.f32 0.0, %v1121
    %1123 = vmatmul.bf16.gmra.mxu0 %v1027
    %v1124 = vpop.f32.mrf.mxu0
    %v1125 = vadd.f32 0.0, %v1124
    %v1126 = vpop.f32.mrf.mxu0
    %v1127 = vadd.f32 0.0, %v1126
    %1128 = vmatmul.bf16.gmra.mxu0 %v1028
    %v1129 = vpop.f32.mrf.mxu0
    %v1130 = vadd.f32 0.0, %v1129
    %v1131 = vpop.f32.mrf.mxu0
    %v1132 = vadd.f32 0.0, %v1131
    %1133 = vmatmul.bf16.gmra.mxu0 %v1029
    %v1134 = vpop.f32.mrf.mxu0
    %v1135 = vadd.f32 0.0, %v1134
    %v1136 = vpop.f32.mrf.mxu0
    %v1137 = vadd.f32 0.0, %v1136
    %1138 = vmatmul.bf16.gmra.mxu0 %v1030
    %v1139 = vpop.f32.mrf.mxu0
    %v1140 = vadd.f32 0.0, %v1139
    %v1141 = vpop.f32.mrf.mxu0
    %v1142 = vadd.f32 0.0, %v1141
    %1143 = vdwg.mxu0
    %v1144 = vpack.c.bf16 %v1107, %v1105
    %v1145 = vpack.c.bf16 %v1112, %v1110
    %v1146 = vpack.c.bf16 %v1117, %v1115
    %v1147 = vpack.c.bf16 %v1122, %v1120
    %v1148 = vpack.c.bf16 %v1127, %v1125
    %v1149 = vpack.c.bf16 %v1132, %v1130
    %v1150 = vpack.c.bf16 %v1137, %v1135
    %v1151 = vpack.c.bf16 %v1142, %v1140
    %1152 = vmatpush.bf16.msra.mxu0 %v1151
    %1153 = vmatpush.bf16.msra.mxu0 %v1150
    %1154 = vmatpush.bf16.msra.mxu0 %v1149
    %1155 = vmatpush.bf16.msra.mxu0 %v1148
    %1156 = vmatpush.bf16.msra.mxu0 %v1147
    %1157 = vmatpush.bf16.msra.mxu0 %v1146
    %1158 = vmatpush.bf16.msra.mxu0 %v1145
    %1159 = vmatpush.bf16.msra.mxu0 %v1144
    %1160 = vmatmul.bf16.gmra.mxu0 %v434
    %v1161 = vpop.f32.mrf.mxu0
    %v1162 = vadd.f32 0.0, %v1161
    %v1163 = vpop.f32.mrf.mxu0
    %v1164 = vadd.f32 0.0, %v1163
    %1165 = vmatmul.bf16.gmra.mxu0 %v435
    %v1166 = vpop.f32.mrf.mxu0
    %v1167 = vadd.f32 0.0, %v1166
    %v1168 = vpop.f32.mrf.mxu0
    %v1169 = vadd.f32 0.0, %v1168
    %1170 = vmatmul.bf16.gmra.mxu0 %v436
    %v1171 = vpop.f32.mrf.mxu0
    %v1172 = vadd.f32 0.0, %v1171
    %v1173 = vpop.f32.mrf.mxu0
    %v1174 = vadd.f32 0.0, %v1173
    %1175 = vmatmul.bf16.gmra.mxu0 %v437
    %v1176 = vpop.f32.mrf.mxu0
    %v1177 = vadd.f32 0.0, %v1176
    %v1178 = vpop.f32.mrf.mxu0
    %v1179 = vadd.f32 0.0, %v1178
    %1180 = vmatmul.bf16.gmra.mxu0 %v438
    %v1181 = vpop.f32.mrf.mxu0
    %v1182 = vadd.f32 0.0, %v1181
    %v1183 = vpop.f32.mrf.mxu0
    %v1184 = vadd.f32 0.0, %v1183
    %1185 = vmatmul.bf16.gmra.mxu0 %v439
    %v1186 = vpop.f32.mrf.mxu0
    %v1187 = vadd.f32 0.0, %v1186
    %v1188 = vpop.f32.mrf.mxu0
    %v1189 = vadd.f32 0.0, %v1188
    %1190 = vmatmul.bf16.gmra.mxu0 %v440
    %v1191 = vpop.f32.mrf.mxu0
    %v1192 = vadd.f32 0.0, %v1191
    %v1193 = vpop.f32.mrf.mxu0
    %v1194 = vadd.f32 0.0, %v1193
    %1195 = vmatmul.bf16.gmra.mxu0 %v441
    %v1196 = vpop.f32.mrf.mxu0
    %v1197 = vadd.f32 0.0, %v1196
    %v1198 = vpop.f32.mrf.mxu0
    %v1199 = vadd.f32 0.0, %v1198
    %1200 = vdwg.mxu0
    %v1201 = vld [vmem:[%s13] sm:$0x1]
    %v1203 = vperm.slane %v1201, 0
    %v1205 = vmul.f32 %v1162, %v1203
    %v1206 = vmul.f32 %v1164, %v1203
    %v1207 = vmul.f32 %v1167, %v1203
    %v1208 = vmul.f32 %v1169, %v1203
    %v1209 = vmul.f32 %v1172, %v1203
    %v1210 = vmul.f32 %v1174, %v1203
    %v1211 = vmul.f32 %v1177, %v1203
    %v1212 = vmul.f32 %v1179, %v1203
    %v1213 = vmul.f32 %v1182, %v1203
    %v1214 = vmul.f32 %v1184, %v1203
    %v1215 = vmul.f32 %v1187, %v1203
    %v1216 = vmul.f32 %v1189, %v1203
    %v1217 = vmul.f32 %v1192, %v1203
    %v1218 = vmul.f32 %v1194, %v1203
    %v1219 = vmul.f32 %v1197, %v1203
    %v1220 = vmul.f32 %v1199, %v1203
    %v1221 = vld [vmem:[%s14] sm:$0x1]
    %v1223 = vperm.slane %v1221, 0
    %v1225 = vadd.f32 %v1205, %v1223
    %v1226 = vadd.f32 %v1206, %v1223
    %v1227 = vadd.f32 %v1207, %v1223
    %v1228 = vadd.f32 %v1208, %v1223
    %v1229 = vadd.f32 %v1209, %v1223
    %v1230 = vadd.f32 %v1210, %v1223
    %v1231 = vadd.f32 %v1211, %v1223
    %v1232 = vadd.f32 %v1212, %v1223
    %v1233 = vadd.f32 %v1213, %v1223
    %v1234 = vadd.f32 %v1214, %v1223
    %v1235 = vadd.f32 %v1215, %v1223
    %v1236 = vadd.f32 %v1216, %v1223
    %v1237 = vadd.f32 %v1217, %v1223
    %v1238 = vadd.f32 %v1218, %v1223
    %v1239 = vadd.f32 %v1219, %v1223
    %v1240 = vadd.f32 %v1220, %v1223
    %v1241 = vmax.f32 %v1225, 0.0
    %v1242 = vmax.f32 %v1226, 0.0
    %v1243 = vmax.f32 %v1227, 0.0
    %v1244 = vmax.f32 %v1228, 0.0
    %v1245 = vmax.f32 %v1229, 0.0
    %v1246 = vmax.f32 %v1230, 0.0
    %v1247 = vmax.f32 %v1231, 0.0
    %v1248 = vmax.f32 %v1232, 0.0
    %v1249 = vmax.f32 %v1233, 0.0
    %v1250 = vmax.f32 %v1234, 0.0
    %v1251 = vmax.f32 %v1235, 0.0
    %v1252 = vmax.f32 %v1236, 0.0
    %v1253 = vmax.f32 %v1237, 0.0
    %v1254 = vmax.f32 %v1238, 0.0
    %v1255 = vmax.f32 %v1239, 0.0
    %v1256 = vmax.f32 %v1240, 0.0
    %v1257 = vpack.c.bf16 %v1242, %v1241
    %v1258 = vpack.c.bf16 %v1244, %v1243
    %v1259 = vpack.c.bf16 %v1246, %v1245
    %v1260 = vpack.c.bf16 %v1248, %v1247
    %v1261 = vpack.c.bf16 %v1250, %v1249
    %v1262 = vpack.c.bf16 %v1252, %v1251
    %v1263 = vpack.c.bf16 %v1254, %v1253
    %v1264 = vpack.c.bf16 %v1256, %v1255
    %v1265 = vld [vmem:[#allocation7] sm:$0xf]
    %1266 = vmatpush.bf16.msra.mxu0 %v1264
    %1267 = vmatpush.bf16.msra.mxu0 %v1263
    %1268 = vmatpush.bf16.msra.mxu0 %v1262
    %1269 = vmatpush.bf16.msra.mxu0 %v1261
    %1270 = vmatpush.bf16.msra.mxu0 %v1260
    %1271 = vmatpush.bf16.msra.mxu0 %v1259
    %1272 = vmatpush.bf16.msra.mxu0 %v1258
    %1273 = vmatpush.bf16.msra.mxu0 %v1257
    %1274 = vmatmul.bf16.gmra.mxu0 %v1265
    %v1275 = vpop.f32.mrf.mxu0
    %v1276 = vadd.f32 0.0, %v1275
    %v1277 = vpop.f32.mrf.mxu0
    %1278 = vdwg.mxu0
    %v1279 = vld [vmem:[#allocation14] sm:$0xff]
    %v1280 = vld [vmem:[#allocation14 + $0x8] sm:$0xff]
    %v1281 = vld [vmem:[#allocation14 + $0x10] sm:$0xff]
    %v1282 = vld [vmem:[#allocation14 + $0x18] sm:$0xff]
    %v1283 = vld [vmem:[#allocation14 + $0x20] sm:$0xff]
    %v1284 = vld [vmem:[#allocation14 + $0x28] sm:$0xff]
    %v1285 = vld [vmem:[#allocation14 + $0x30] sm:$0xff]
    %v1286 = vld [vmem:[#allocation14 + $0x38] sm:$0xff]
    %v1287 = vld [vmem:[#allocation14 + $0x40] sm:$0xff]
    %v1288 = vld [vmem:[#allocation14 + $0x48] sm:$0xff]
    %v1289 = vld [vmem:[#allocation14 + $0x50] sm:$0xff]
    %v1290 = vld [vmem:[#allocation14 + $0x58] sm:$0xff]
    %v1291 = vld [vmem:[#allocation14 + $0x60] sm:$0xff]
    %v1292 = vld [vmem:[#allocation14 + $0x68] sm:$0xff]
    %v1293 = vld [vmem:[#allocation14 + $0x70] sm:$0xff]
    %v1294 = vld [vmem:[#allocation14 + $0x78] sm:$0xff]
    %v1295 = vld [vmem:[%s16] sm:$0x1]
    %v1297 = vperm.slane %v1295, 0
    %1299 = vmatpush.msra.mxu0 %v1294
    %1300 = vmatpush.msra.mxu0 %v1293
    %1301 = vmatpush.msra.mxu0 %v1292
    %1302 = vmatpush.msra.mxu0 %v1291
    %1303 = vmatpush.msra.mxu0 %v1290
    %1304 = vmatpush.msra.mxu0 %v1289
    %1305 = vmatpush.msra.mxu0 %v1288
    %1306 = vmatpush.msra.mxu0 %v1287
    %1307 = vmatpush.msra.mxu0 %v1286
    %1308 = vmatpush.msra.mxu0 %v1285
    %1309 = vmatpush.msra.mxu0 %v1284
    %1310 = vmatpush.msra.mxu0 %v1283
    %1311 = vmatpush.msra.mxu0 %v1282
    %1312 = vmatpush.msra.mxu0 %v1281
    %1313 = vmatpush.msra.mxu0 %v1280
    %1314 = vmatpush.msra.mxu0 %v1279
    %1315 = vmatmul.f32.gmra.mxu0 %v1276
    %v1316 = vpop.f32.mrf.mxu0
    %v1317 = vadd.f32 %v1297, %v1316
    %1318 = vdwg.mxu0
    %v1319 = vmax.f32 %v1317, 0.0
    %v1320 = vld [vmem:[#allocation16] sm:$0xff]
    %v1321 = vld [vmem:[#allocation16 + $0x8] sm:$0xff]
    %v1322 = vld [vmem:[#allocation16 + $0x10] sm:$0xff]
    %v1323 = vld [vmem:[#allocation16 + $0x18] sm:$0xff]
    %v1324 = vld [vmem:[#allocation16 + $0x20] sm:$0xff]
    %v1325 = vld [vmem:[#allocation16 + $0x28] sm:$0xff]
    %v1326 = vld [vmem:[#allocation16 + $0x30] sm:$0xff]
    %v1327 = vld [vmem:[#allocation16 + $0x38] sm:$0xff]
    %v1328 = vld [vmem:[#allocation16 + $0x40] sm:$0xff]
    %v1329 = vld [vmem:[#allocation16 + $0x48] sm:$0xff]
    %v1330 = vld [vmem:[#allocation16 + $0x50] sm:$0xff]
    %v1331 = vld [vmem:[#allocation16 + $0x58] sm:$0xff]
    %v1332 = vld [vmem:[#allocation16 + $0x60] sm:$0xff]
    %v1333 = vld [vmem:[#allocation16 + $0x68] sm:$0xff]
    %v1334 = vld [vmem:[#allocation16 + $0x70] sm:$0xff]
    %v1335 = vld [vmem:[#allocation16 + $0x78] sm:$0xff]
    %v1336 = vld [vmem:[%s18] sm:$0x1]
    %v1338 = vperm.slane %v1336, 0
    %1340 = vmatpush.msra.mxu0 %v1335
    %1341 = vmatpush.msra.mxu0 %v1334
    %1342 = vmatpush.msra.mxu0 %v1333
    %1343 = vmatpush.msra.mxu0 %v1332
    %1344 = vmatpush.msra.mxu0 %v1331
    %1345 = vmatpush.msra.mxu0 %v1330
    %1346 = vmatpush.msra.mxu0 %v1329
    %1347 = vmatpush.msra.mxu0 %v1328
    %1348 = vmatpush.msra.mxu0 %v1327
    %1349 = vmatpush.msra.mxu0 %v1326
    %1350 = vmatpush.msra.mxu0 %v1325
    %1351 = vmatpush.msra.mxu0 %v1324
    %1352 = vmatpush.msra.mxu0 %v1323
    %1353 = vmatpush.msra.mxu0 %v1322
    %1354 = vmatpush.msra.mxu0 %v1321
    %1355 = vmatpush.msra.mxu0 %v1320
    %1356 = vmatmul.f32.gmra.mxu0 %v1319
    %v1357 = vpop.f32.mrf.mxu0
    %v1358 = vadd.f32 %v1338, %v1357
    %1359 = vdwg.mxu0
    %1360 = vst [vmem:[#allocation17] sm:$0xff] %v1358
    // Predicated region
    $region114: #{tpu_custom_call.1} parent=1 // pred_check
      _
    $region115: #{tpu_custom_call.1} parent=1 // pred_check_branch
      %1362 = sbr.rel (0) target = $region117
    $region116: #{tpu_custom_call.1} parent=1 // pred_region
      %1364 = vsyncadd [#allocation4], 0
      %s1366 = sshll.u32 [#allocation17], 4
      %s1367 = int_to_ptr.vmem [resolvable:$true] %s1366
      %s1368 = sshll.u32 %s19, 4
      %s1369 = int_to_ptr.hbm [resolvable:$true] %s1368
      %1371 = dma.vmem_to_hbm [thread:$0]  %s1367, 128, %s1369, [#allocation4]
    $region117: #{tpu_custom_call.1} parent=1 // pred_fallthru
      _
    // Predicated region
    $region118: #{tpu_custom_call.1} parent=1 // pred_check
      _
    $region119: #{tpu_custom_call.1} parent=1 // pred_check_branch
      %1373 = sbr.rel (0) target = $region121
    $region120: #{tpu_custom_call.1} parent=1 // pred_region
      %1375 = dma.done [#allocation4], 128
    $region121: #{tpu_custom_call.1} parent=1 // pred_fallthru
      _
    %1376 = vsyncpa [#allocation3], 1
    %1377 = vsyncpa [#allocation6], 1
    %1378 = vsyncpa [#allocation9], 1
    %1379 = vsyncpa [#allocation12], 1
    %1380 = vsyncpa [#allocation15], 1
    %1381 = vsyncpa [#allocation4], 1

</llo_original>
